<compile_context>
chip_gen: v6e
topology: v6e:2x2x1
jax: 0.10.0
libtpu: 0.0.40
codegen_flags: <defaults>
</compile_context>

<pallas_src>
import numpy as np
import jax
import jax.numpy as jnp
from jax import lax
from jax.experimental import pallas as pl
from jax.experimental.pallas import tpu as pltpu

_HIGHEST = lax.Precision.HIGHEST


def _round_up(n, m):
    return ((n + m - 1) // m) * m


# ----------------------------- Pallas kernels --------------------------------
def _val_only_kernel(xg_ref, sel_ref, a_ref, freq_ref, phase_ref, out_ref):
    """valOnly, lane-grouped.

    xg_ref   : (TB, G*d_in)    G batch rows packed along lanes (free reshape of x)
    sel_ref  : (G*d_in, G*d_out)  0/1 replication matrix (exact under HIGHEST)
    a_ref    : (1, G*d_out)    1.0 on raw-input lanes (include_input), else 0.0
    freq_ref : (1, G*d_out)    per-lane frequency (0 on raw-input lanes)
    phase_ref: (1, G*d_out)    per-lane phase     (0 on raw-input lanes)
    out_ref  : (TB, G*d_out)
    """
    xg = xg_ref[...]
    xrep = jnp.dot(xg, sel_ref[...], precision=_HIGHEST,
                   preferred_element_type=jnp.float32)          # (TB, G*d_out)
    out = a_ref[...] * xrep + jnp.sin(phase_ref[...] + xrep * freq_ref[...])
    out_ref[...] = out.astype(out_ref.dtype)


def _grad_track_kernel(x_ref, rep_ref, freq_ref, phase_ref,
                       px_ref, ps_ref, pg_ref, eye_ref, out_ref):
    """gradTrack: emit the flat (TB, 4*d_out) slab (free view of (B, d_out, 4)).

    x_ref    : (TB, d_in)
    rep_ref  : (d_in, 2F*d_in)     x -> per-sin-feature coordinate (0/1, exact)
    freq_ref : (1, 2F*d_in)        per-sin-feature frequency
    phase_ref: (1, 2F*d_in)        per-sin-feature phase
    px_ref   : (d_in, 4*d_out)     x -> value channel of raw-input features
    ps_ref   : (2F*d_in, 4*d_out)  sin -> value channel of sin features
    pg_ref   : (2F*d_in, 4*d_out)  freq*cos -> diagonal gradient channel
    eye_ref  : (1, 4*d_out)        identity diagonal for raw-input features
    out_ref  : (TB, 4*d_out)
    """
    x = x_ref[...]
    xt = jnp.dot(x, rep_ref[...], precision=_HIGHEST,
                 preferred_element_type=jnp.float32)            # (TB, 2F*d_in)
    freq = freq_ref[...]
    arg = phase_ref[...] + xt * freq
    s = jnp.sin(arg)                                            # val (compact)
    gc = freq * jnp.cos(arg)                                    # grad diag (compact)
    out = (jnp.dot(x, px_ref[...], precision=_HIGHEST, preferred_element_type=jnp.float32)
           + jnp.dot(s, ps_ref[...], precision=_HIGHEST, preferred_element_type=jnp.float32)
           + jnp.dot(gc, pg_ref[...], precision=_HIGHEST, preferred_element_type=jnp.float32)
           + eye_ref[...])
    out_ref[...] = out.astype(out_ref.dtype)


# ----------------------------- Module wrapper ---------------------------------
class PositionalEncodingPallas:
    _GROUPS = (16, 8, 4, 2, 1)     # batch->lane packing candidates for valOnly
    _VAL_TILE = 1024               # grouped rows per block (<= ~6 MB double-buffered)
    _GRAD_TILE = 2048              # rows per block for gradTrack

    def __init__(self, num_freqs=6, d_in=3, freq_factor=np.pi, include_input=True,
                 out_dtype=jnp.float32):
        self.num_freqs = num_freqs
        self.d_in = d_in
        self.freq_factor = float(freq_factor)
        self.include_input = include_input
        self.out_dtype = out_dtype             # bf16 is worthwhile on v6e/v7x if allowed
        self.head = d_in if include_input else 0
        self.d_out = 2 * num_freqs * d_in + self.head

        F2 = 2 * num_freqs
        k = np.arange(F2)
        freq_k = self.freq_factor * (2.0 ** (k // 2))            # repeat_interleave(freqs, 2)
        phase_k = np.where(k % 2 == 1, np.pi * 0.5, 0.0)
        # per sin-feature (i = k*d_in + d) constants
        self._freq_feat = np.repeat(freq_k, d_in).astype(np.float32)    # (2F*d_in,)
        self._phase_feat = np.repeat(phase_k, d_in).astype(np.float32)

        self._val_consts_cache = {}
        self._grad_consts = None

        self._val_jit = jax.jit(self._forward_val_only)
        self._grad_jit = jax.jit(self._forward_grad_track)

    # ------------------------- constant tables --------------------------------
    def _val_consts(self, G):
        c = self._val_consts_cache.get(G)
        if c is not None:
            return c
        d_in, d_out, head = self.d_in, self.d_out, self.head
        freq_lane = np.zeros(d_out, np.float32)
        phase_lane = np.zeros(d_out, np.float32)
        a_lane = np.zeros(d_out, np.float32)
        a_lane[:head] = 1.0
        freq_lane[head:] = self._freq_feat
        phase_lane[head:] = self._phase_feat
        freq_row = np.tile(freq_lane, G)[None, :]
        phase_row = np.tile(phase_lane, G)[None, :]
        a_row = np.tile(a_lane, G)[None, :]
        # sel[g*d_in + (j % d_in), g*d_out + j] = 1  -> x coordinate for output lane j
        sel = np.zeros((G * d_in, G * d_out), np.float32)
        for g in range(G):
            for j in range(d_out):
                sel[g * d_in + (j % d_in), g * d_out + j] = 1.0
        c = tuple(jnp.asarray(v) for v in (sel, a_row, freq_row, phase_row))
        self._val_consts_cache[G] = c
        return c

    def _get_grad_consts(self):
        if self._grad_consts is not None:
            return self._grad_consts
        assert self.d_in == 3, "gradTrack requires d_in == 3 (as in the PyTorch module)"
        d_in, d_out, head = self.d_in, self.d_out, self.head
        F2 = 2 * self.num_freqs
        nfeat = F2 * d_in
        W = 4 * d_out
        rep = np.zeros((d_in, nfeat), np.float32)
        for kk in range(F2):
            for d in range(d_in):
                rep[d, kk * d_in + d] = 1.0
        px = np.zeros((d_in, W), np.float32)
        eye_row = np.zeros((1, W), np.float32)
        if self.include_input:
            for j in range(d_in):
                px[j, 4 * j] = 1.0                       # value channel of input feature
                eye_row[0, 4 * j + 1 + j] = 1.0          # identity diagonal
        ps = np.zeros((nfeat, W), np.float32)
        pg = np.zeros((nfeat, W), np.float32)
        for i in range(nfeat):
            jfeat = head + i
            ps[i, 4 * jfeat] = 1.0                       # sin -> value channel
            pg[i, 4 * jfeat + 1 + (i % d_in)] = 1.0      # freq*cos -> diag grad channel
        freq_row = self._freq_feat[None, :]
        phase_row = self._phase_feat[None, :]
        self._grad_consts = tuple(jnp.asarray(v) for v in
                                  (rep, freq_row, phase_row, px, ps, pg, eye_row))
        return self._grad_consts

    # ------------------------- forwardMode == 'valOnly' ------------------------
    def _forward_val_only(self, x):
        assert x.ndim == 2 and x.shape[1] == self.d_in
        x = x.astype(jnp.float32)
        B = x.shape[0]
        d_in, d_out = self.d_in, self.d_out
        G = max(g for g in self._GROUPS if B % g == 0)
        Bg = B // G
        sel, a_row, freq_row, phase_row = self._val_consts(G)

        xg = x.reshape(Bg, G * d_in)                     # free row-major view
        tb = min(self._VAL_TILE, _round_up(Bg, 8))
        grid = (pl.cdiv(Bg, tb),)
        Lin, Lout = G * d_in, G * d_out

        out = pl.pallas_call(
            _val_only_kernel,
            out_shape=jax.ShapeDtypeStruct((Bg, Lout), self.out_dtype),
            grid=grid,
            in_specs=[
                pl.BlockSpec((tb, Lin), lambda i: (i, 0)),
                pl.BlockSpec((Lin, Lout), lambda i: (0, 0)),
                pl.BlockSpec((1, Lout), lambda i: (0, 0)),
                pl.BlockSpec((1, Lout), lambda i: (0, 0)),
                pl.BlockSpec((1, Lout), lambda i: (0, 0)),
            ],
            out_specs=pl.BlockSpec((tb, Lout), lambda i: (i, 0)),
            compiler_params=pltpu.CompilerParams(
                dimension_semantics=("parallel",),
                vmem_limit_bytes=32 * 1024 * 1024),
        )(xg, sel, a_row, freq_row, phase_row)
        return out.reshape(B, d_out)                     # free row-major view

    # ------------------------- forwardMode == 'gradTrack' ----------------------
    def _forward_grad_track(self, x):
        assert x.ndim == 2 and x.shape[1] == self.d_in
        x = x.astype(jnp.float32)
        B = x.shape[0]
        d_in, d_out = self.d_in, self.d_out
        rep, freq_row, phase_row, px, ps, pg, eye_row = self._get_grad_consts()
        nfeat = rep.shape[1]
        W = 4 * d_out
        tb = min(self._GRAD_TILE, _round_up(B, 8))
        grid = (pl.cdiv(B, tb),)

        out = pl.pallas_call(
            _grad_track_kernel,
            out_shape=jax.ShapeDtypeStruct((B, W), self.out_dtype),
            grid=grid,
            in_specs=[
                pl.BlockSpec((tb, d_in), lambda i: (i, 0)),
                pl.BlockSpec((d_in, nfeat), lambda i: (0, 0)),
                pl.BlockSpec((1, nfeat), lambda i: (0, 0)),
                pl.BlockSpec((1, nfeat), lambda i: (0, 0)),
                pl.BlockSpec((d_in, W), lambda i: (0, 0)),
                pl.BlockSpec((nfeat, W), lambda i: (0, 0)),
                pl.BlockSpec((nfeat, W), lambda i: (0, 0)),
                pl.BlockSpec((1, W), lambda i: (0, 0)),
            ],
            out_specs=pl.BlockSpec((tb, W), lambda i: (i, 0)),
            compiler_params=pltpu.CompilerParams(
                dimension_semantics=("parallel",),
                vmem_limit_bytes=32 * 1024 * 1024),
        )(x, rep, freq_row, phase_row, px, ps, pg, eye_row)
        return out.reshape(B, d_out, 4)                  # free row-major view

    # ------------------------- public API --------------------------------------
    def forward_val_only(self, x):
        return self._val_jit(x)

    def forward_grad_track(self, x):
        return self._grad_jit(x)

    def __call__(self, x, forward_mode):
        if forward_mode == "valOnly":
            return self.forward_val_only(x)
        elif forward_mode == "gradTrack":
            return self.forward_grad_track(x)
        raise NotImplementedError("Unknown forwardMode: %s" % forward_mode)


# ----------------------------- NumPy references --------------------------------
def _ref_val_only(x, num_freqs, include_input, freq_factor=np.pi):
    B = x.shape[0]
    freqs = freq_factor * (2.0 ** np.arange(num_freqs))
    freqs_ri = np.repeat(freqs, 2).reshape(1, -1, 1)
    phases = np.zeros(2 * num_freqs)
    phases[1::2] = np.pi * 0.5
    phases = phases.reshape(1, -1, 1)
    emb = np.repeat(x[:, None, :], 2 * num_freqs, axis=1)
    emb = np.sin(phases + emb * freqs_ri).reshape(B, -1)
    if include_input:
        emb = np.concatenate([x, emb], axis=-1)
    return emb


def _ref_grad_track(x, num_freqs, include_input, freq_factor=np.pi):
    B = x.shape[0]
    freqs = freq_factor * (2.0 ** np.arange(num_freqs))
    freqs_ri = np.repeat(freqs, 2).reshape(1, -1, 1)
    phases = np.zeros(2 * num_freqs)
    phases[1::2] = np.pi * 0.5
    phases = phases.reshape(1, -1, 1)
    emb = np.repeat(x[:, None, :], 2 * num_freqs, axis=1)
    val = np.sin(phases + emb * freqs_ri)
    gdiag = freqs_ri * np.cos(phases + emb * freqs_ri)
    z = np.zeros_like(gdiag)
    gthree = np.concatenate(
        [gdiag[..., 0:1], z, gdiag[..., 1:2], z, gdiag[..., 2:3]], axis=-1)
    gthree = gthree.reshape(B, 2 * num_freqs, 3, 3).reshape(B, 2 * num_freqs * 3, 3)
    val = val.reshape(B, -1)
    if include_input:
        val = np.concatenate([x, val], axis=1)
        eye = np.broadcast_to(np.eye(3, dtype=gthree.dtype), (B, 3, 3))
        gthree = np.concatenate([eye, gthree], axis=1)
    return np.concatenate([val[:, :, None], gthree], axis=2)


if __name__ == "__main__":
    key = jax.random.PRNGKey(0)
    B, d_in, num_freqs = 256, 3, 6
    x = jax.random.normal(key, (B, d_in), dtype=jnp.float32)

    pe = PositionalEncodingPallas(num_freqs=num_freqs, d_in=d_in, include_input=True)

    val = pe(x, "valOnly")            # (B, 39)
    out_four = pe(x, "gradTrack")     # (B, 39, 4)
    jax.block_until_ready(val)
    jax.block_until_ready(out_four)

    x_np = np.asarray(x, dtype=np.float32)
    ref_val = _ref_val_only(x_np, num_freqs, include_input=True)
    ref_four = _ref_grad_track(x_np, num_freqs, include_input=True)

    assert val.shape == (B, pe.d_out)
    assert out_four.shape == (B, pe.d_out, 4)
    assert np.allclose(np.asarray(val), ref_val, rtol=1e-3, atol=1e-3), "valOnly mismatch"
    assert np.allclose(np.asarray(out_four), ref_four, rtol=1e-3, atol=5e-3), "gradTrack mismatch"

    print("KERNEL_OK")
</pallas_src>

<mosaic_0001>
module attributes {stable_mosaic.version = 11 : i64} {
  func.func @_val_only_kernel(%arg0: i32, %arg1: memref<16x48xf32, #tpu.memory_space<vmem>>, %arg2: memref<48x624xf32, #tpu.memory_space<vmem>>, %arg3: memref<1x624xf32, #tpu.memory_space<vmem>>, %arg4: memref<1x624xf32, #tpu.memory_space<vmem>>, %arg5: memref<1x624xf32, #tpu.memory_space<vmem>>, %arg6: memref<16x624xf32, #tpu.memory_space<vmem>>) attributes {dimension_semantics = [#tpu.dimension_semantics<parallel>], iteration_bounds = array<i64: 1>, scalar_prefetch = 0 : i64, scratch_operands = 0 : i64, tpu.core_type = #tpu.core_type<tc>, window_params = [{transform_indices = @transform_0, window_bounds = array<i64: 16, 48>}, {pipeline_mode = #tpu.pipeline_mode<synchronous>, transform_indices = @transform_1, window_bounds = array<i64: 48, 624>}, {pipeline_mode = #tpu.pipeline_mode<synchronous>, transform_indices = @transform_2, window_bounds = array<i64: 1, 624>}, {pipeline_mode = #tpu.pipeline_mode<synchronous>, transform_indices = @transform_3, window_bounds = array<i64: 1, 624>}, {pipeline_mode = #tpu.pipeline_mode<synchronous>, transform_indices = @transform_4, window_bounds = array<i64: 1, 624>}, {transform_indices = @transform_5, window_bounds = array<i64: 16, 624>}]} {
    %c0 = arith.constant 0 : index
    %c0_0 = arith.constant 0 : index
    %0 = vector.load %arg1[%c0, %c0_0] : memref<16x48xf32, #tpu.memory_space<vmem>>, vector<16x48xf32>
    %c0_1 = arith.constant 0 : index
    %c0_2 = arith.constant 0 : index
    %1 = vector.load %arg2[%c0_1, %c0_2] : memref<48x624xf32, #tpu.memory_space<vmem>>, vector<48x624xf32>
    %cst = arith.constant dense<0.000000e+00> : vector<16x624xf32>
    %2 = tpu.matmul %0, %1, %cst {dimension_numbers = #tpu.dot_dimension_numbers<[1], [0], [0], [1], [0, 0, 1, 1], [], []>, precision = #tpu.contract_precision<fp32>} : vector<16x48xf32>, vector<48x624xf32>, vector<16x624xf32> -> vector<16x624xf32>
    %c0_3 = arith.constant 0 : index
    %c0_4 = arith.constant 0 : index
    %3 = vector.load %arg3[%c0_3, %c0_4] : memref<1x624xf32, #tpu.memory_space<vmem>>, vector<1x624xf32>
    %4 = vector.broadcast %3 : vector<1x624xf32> to vector<16x624xf32>
    %5 = arith.mulf %4, %2 : vector<16x624xf32>
    %c0_5 = arith.constant 0 : index
    %c0_6 = arith.constant 0 : index
    %6 = vector.load %arg5[%c0_5, %c0_6] : memref<1x624xf32, #tpu.memory_space<vmem>>, vector<1x624xf32>
    %c0_7 = arith.constant 0 : index
    %c0_8 = arith.constant 0 : index
    %7 = vector.load %arg4[%c0_7, %c0_8] : memref<1x624xf32, #tpu.memory_space<vmem>>, vector<1x624xf32>
    %8 = vector.broadcast %7 : vector<1x624xf32> to vector<16x624xf32>
    %9 = arith.mulf %2, %8 : vector<16x624xf32>
    %10 = vector.broadcast %6 : vector<1x624xf32> to vector<16x624xf32>
    %11 = arith.addf %10, %9 : vector<16x624xf32>
    %12 = math.sin %11 : vector<16x624xf32>
    %13 = arith.addf %5, %12 : vector<16x624xf32>
    %c0_9 = arith.constant 0 : index
    %c0_10 = arith.constant 0 : index
    %14 = vector.load %arg6[%c0_9, %c0_10] : memref<16x624xf32, #tpu.memory_space<vmem>>, vector<16x624xf32>
    tpu.vector_store %arg6[%c0_9, %c0_10], %13 {strides = array<i32>} : memref<16x624xf32, #tpu.memory_space<vmem>>, vector<16x624xf32>,
    return
  }
  func.func @transform_0(%arg0: i32) -> (i32, i32) {
    %c0_i32 = arith.constant 0 : i32
    %c0_i32_0 = arith.constant 0 : i32
    return %arg0, %c0_i32 : i32, i32
  }
  func.func @transform_1(%arg0: i32) -> (i32, i32) {
    %c0_i32 = arith.constant 0 : i32
    %c0_i32_0 = arith.constant 0 : i32
    %c0_i32_1 = arith.constant 0 : i32
    return %c0_i32, %c0_i32_0 : i32, i32
  }
  func.func @transform_2(%arg0: i32) -> (i32, i32) {
    %c0_i32 = arith.constant 0 : i32
    %c0_i32_0 = arith.constant 0 : i32
    %c0_i32_1 = arith.constant 0 : i32
    return %c0_i32, %c0_i32_0 : i32, i32
  }
  func.func @transform_3(%arg0: i32) -> (i32, i32) {
    %c0_i32 = arith.constant 0 : i32
    %c0_i32_0 = arith.constant 0 : i32
    %c0_i32_1 = arith.constant 0 : i32
    return %c0_i32, %c0_i32_0 : i32, i32
  }
  func.func @transform_4(%arg0: i32) -> (i32, i32) {
    %c0_i32 = arith.constant 0 : i32
    %c0_i32_0 = arith.constant 0 : i32
    %c0_i32_1 = arith.constant 0 : i32
    return %c0_i32, %c0_i32_0 : i32, i32
  }
  func.func @transform_5(%arg0: i32) -> (i32, i32) {
    %c0_i32 = arith.constant 0 : i32
    %c0_i32_0 = arith.constant 0 : i32
    return %arg0, %c0_i32 : i32, i32
  }
}

</mosaic_0001>

<llo_original>
// kernel: _forward_val_only.1
$region0: #{_forward_val_only.1}
  #allocation0 [shape = 'u32[]', space=smem, size = 0x4, offset = 0x4, fixed_abs, tag = 'smem constant byte address 0x4 - core index']
  #allocation1 [shape = 'u32[144,128]{1,0:T(1,128)}', space=vmem, size = 0x12000, scoped, tag = 'internal scratch']
  %s0 = inlined_call_operand.vmem [shape: f32[16,48], index: 0, kind: input, shape index: {}]
  %s1 = inlined_call_operand.vmem [shape: f32[48,624], index: 1, kind: input, shape index: {}]
  %s2 = inlined_call_operand.vmem [shape: f32[1,624], index: 2, kind: input, shape index: {}]
  %s3 = inlined_call_operand.vmem [shape: f32[1,624], index: 3, kind: input, shape index: {}]
  %s4 = inlined_call_operand.vmem [shape: f32[1,624], index: 4, kind: input, shape index: {}]
  %s5 = inlined_call_operand.vmem [shape: f32[16,624], index: 5, kind: output, shape index: {}]
  %s6 = sld [smem:[#allocation0]]
  $region30: #{_forward_val_only.1} parent=0
    _
  %s8 = ssub.s32 1, %s6
  %s9 = scalar_select 0, %s8, %s6
  // Predicated region
  $region2: #{_forward_val_only.1} parent=0 // pred_check
    _
  $region3: #{_forward_val_only.1} parent=0 // pred_check_branch
    %11 = sbr.rel (0) target = $region5
  $region4: #{_forward_val_only.1} parent=0 // pred_region
    _
  $region5: #{_forward_val_only.1} parent=0 // pred_fallthru
    _
  // Predicated region
  $region6: #{_forward_val_only.1} parent=0 // pred_check
    _
  $region7: #{_forward_val_only.1} parent=0 // pred_check_branch
    %13 = sbr.rel (0) target = $region9
  $region8: #{_forward_val_only.1} parent=0 // pred_region
    _
  $region9: #{_forward_val_only.1} parent=0 // pred_fallthru
    _
  // Predicated region
  $region10: #{_forward_val_only.1} parent=0 // pred_check
    _
  $region11: #{_forward_val_only.1} parent=0 // pred_check_branch
    %15 = sbr.rel (0) target = $region13
  $region12: #{_forward_val_only.1} parent=0 // pred_region
    _
  $region13: #{_forward_val_only.1} parent=0 // pred_fallthru
    _
  // Predicated region
  $region14: #{_forward_val_only.1} parent=0 // pred_check
    _
  $region15: #{_forward_val_only.1} parent=0 // pred_check_branch
    %17 = sbr.rel (0) target = $region17
  $region16: #{_forward_val_only.1} parent=0 // pred_region
    _
  $region17: #{_forward_val_only.1} parent=0 // pred_fallthru
    _
  // Predicated region
  $region18: #{_forward_val_only.1} parent=0 // pred_check
    _
  $region19: #{_forward_val_only.1} parent=0 // pred_check_branch
    %19 = sbr.rel (0) target = $region21
  $region20: #{_forward_val_only.1} parent=0 // pred_region
    _
  $region21: #{_forward_val_only.1} parent=0 // pred_fallthru
    _
  %v20 = vld [vmem:[%s0] sm:$0xff]
  %v21 = vld [vmem:[%s0 + $0x8] sm:$0xff]
  %v22 = vld [vmem:[%s1] sm:$0xff]
  %v23 = vld [vmem:[%s1 + $0x8] sm:$0xff]
  %v24 = vld [vmem:[%s1 + $0x10] sm:$0xff]
  %v25 = vld [vmem:[%s1 + $0x18] sm:$0xff]
  %v26 = vld [vmem:[%s1 + $0x20] sm:$0xff]
  %v27 = vld [vmem:[%s1 + $0x28] sm:$0xff]
  %v28 = vld [vmem:[%s1 + $0x30] sm:$0xff]
  %v29 = vld [vmem:[%s1 + $0x38] sm:$0xff]
  %v30 = vld [vmem:[%s1 + $0x40] sm:$0xff]
  %v31 = vld [vmem:[%s1 + $0x48] sm:$0xff]
  %v32 = vld [vmem:[%s1 + $0x50] sm:$0xff]
  %v33 = vld [vmem:[%s1 + $0x58] sm:$0xff]
  %v34 = vld [vmem:[%s1 + $0x60] sm:$0xff]
  %v35 = vld [vmem:[%s1 + $0x68] sm:$0xff]
  %v36 = vld [vmem:[%s1 + $0x70] sm:$0xff]
  %v37 = vld [vmem:[%s1 + $0x78] sm:$0xff]
  %v38 = vld [vmem:[%s1 + $0x80] sm:$0xff]
  %v39 = vld [vmem:[%s1 + $0x88] sm:$0xff]
  %v40 = vld [vmem:[%s1 + $0x90] sm:$0xff]
  %v41 = vld [vmem:[%s1 + $0x98] sm:$0xff]
  %v42 = vld [vmem:[%s1 + $0xa0] sm:$0xff]
  %v43 = vld [vmem:[%s1 + $0xa8] sm:$0xff]
  %v44 = vld [vmem:[%s1 + $0xb0] sm:$0xff]
  %v45 = vld [vmem:[%s1 + $0xb8] sm:$0xff]
  %v46 = vld [vmem:[%s1 + $0xc0] sm:$0xff]
  %v47 = vld [vmem:[%s1 + $0xc8] sm:$0xff]
  %v48 = vld [vmem:[%s1 + $0xd0] sm:$0xff]
  %v49 = vld [vmem:[%s1 + $0xd8] sm:$0xff]
  %v50 = vld [vmem:[%s1 + $0xe0] sm:$0xff]
  %v51 = vld [vmem:[%s1 + $0xe8] sm:$0xff]
  %vm52 = vcmask 392192
  %v54 = vsel %vm52, %v20, 0
  %v57 = vsel %vm52, %v21, 0
  %59 = vmatprep.subr.mxu0 0.0
  %60 = vmatpush1.msra.mxu0 0.0
  %61 = vmatprep.subr.mxu0 0.0
  %62 = vmatpush1.msra.mxu0 0.0
  %63 = vmatprep.subr.mxu0 0.0
  %64 = vmatpush1.msra.mxu0 0.0
  %65 = vmatprep.subr.mxu0 0.0
  %66 = vmatpush1.msra.mxu0 0.0
  %67 = vmatprep.subr.mxu0 0.0
  %68 = vmatpush1.msra.mxu0 0.0
  %69 = vmatprep.subr.mxu0 0.0
  %70 = vmatpush1.msra.mxu0 0.0
  %71 = vmatprep.subr.mxu0 0.0
  %72 = vmatpush1.msra.mxu0 0.0
  %73 = vmatprep.subr.mxu0 0.0
  %74 = vmatpush1.msra.mxu0 0.0
  %75 = vmatprep.subr.mxu0 0.0
  %76 = vmatpush1.msra.mxu0 0.0
  %77 = vmatprep.subr.mxu0 0.0
  %78 = vmatpush1.msra.mxu0 0.0
  %v79 = vand.u32 %v48, 4294901760
  %80 = vmatprep.subr.mxu0 %v79
  %v81 = vand.u32 %v47, 4294901760
  %82 = vmatpush1.msra.mxu0 %v81
  %v83 = vand.u32 %v43, 4294901760
  %84 = vmatprep.subr.mxu0 %v83
  %v85 = vand.u32 %v42, 4294901760
  %86 = vmatpush1.msra.mxu0 %v85
  %v87 = vand.u32 %v38, 4294901760
  %88 = vmatprep.subr.mxu0 %v87
  %v89 = vand.u32 %v37, 4294901760
  %90 = vmatpush1.msra.mxu0 %v89
  %v91 = vand.u32 %v33, 4294901760
  %92 = vmatprep.subr.mxu0 %v91
  %v93 = vand.u32 %v32, 4294901760
  %94 = vmatpush1.msra.mxu0 %v93
  %v95 = vand.u32 %v28, 4294901760
  %96 = vmatprep.subr.mxu0 %v95
  %v97 = vand.u32 %v27, 4294901760
  %98 = vmatpush1.msra.mxu0 %v97
  %v99 = vand.u32 %v23, 4294901760
  %100 = vmatprep.subr.mxu0 %v99
  %v101 = vand.u32 %v22, 4294901760
  %102 = vmatpush1.msra.mxu0 %v101
  %103 = vmatprep.subr.mxu0 0.0
  %104 = vmatpush2.msra.mxu0 0.0
  %105 = vmatprep.subr.mxu0 0.0
  %106 = vmatpush2.msra.mxu0 0.0
  %107 = vmatprep.subr.mxu0 0.0
  %108 = vmatpush2.msra.mxu0 0.0
  %109 = vmatprep.subr.mxu0 0.0
  %110 = vmatpush2.msra.mxu0 0.0
  %111 = vmatprep.subr.mxu0 0.0
  %112 = vmatpush2.msra.mxu0 0.0
  %113 = vmatprep.subr.mxu0 0.0
  %114 = vmatpush2.msra.mxu0 0.0
  %115 = vmatprep.subr.mxu0 0.0
  %116 = vmatpush2.msra.mxu0 0.0
  %117 = vmatprep.subr.mxu0 0.0
  %118 = vmatpush2.msra.mxu0 0.0
  %119 = vmatprep.subr.mxu0 0.0
  %120 = vmatpush2.msra.mxu0 0.0
  %121 = vmatprep.subr.mxu0 0.0
  %122 = vmatpush2.msra.mxu0 0.0
  %123 = vmatprep.subr.mxu0 0.0
  %124 = vmatpush2.msra.mxu0 0.0
  %125 = vmatprep.subr.mxu0 0.0
  %126 = vmatpush2.msra.mxu0 0.0
  %127 = vmatprep.subr.mxu0 0.0
  %128 = vmatpush2.msra.mxu0 0.0
  %129 = vmatprep.subr.mxu0 0.0
  %130 = vmatpush2.msra.mxu0 0.0
  %131 = vmatprep.subr.mxu0 0.0
  %132 = vmatpush2.msra.mxu0 0.0
  %133 = vmatprep.subr.mxu0 0.0
  %134 = vmatpush2.msra.mxu0 0.0
  %135 = vmatprep.mubr.f32.mxu0 0.0
  %v136 = vand.u32 %v54, 4294901760
  %v137 = vsub.f32 %v54, %v136
  %v138 = vand.u32 %v137, 4294901760
  %v139 = vsub.f32 %v137, %v138
  %v140 = vand.u32 %v139, 4294901760
  %141 = vmatmul.mubr.f32.gmra.mxu0 %v140
  %v142 = vpop.f32.mrf.mxu0
  %v143 = vadd.f32 0.0, %v142
  %v144 = vpop.f32.mrf.mxu0
  %v145 = vadd.f32 0.0, %v144
  %146 = vmatprep.mubr.f32.mxu0 0.0
  %v147 = vand.u32 %v57, 4294901760
  %v148 = vsub.f32 %v57, %v147
  %v149 = vand.u32 %v148, 4294901760
  %v150 = vsub.f32 %v148, %v149
  %v151 = vand.u32 %v150, 4294901760
  %152 = vmatmul.mubr.f32.gmra.mxu0 %v151
  %v153 = vpop.f32.mrf.mxu0
  %v154 = vadd.f32 0.0, %v153
  %v155 = vpop.f32.mrf.mxu0
  %v156 = vadd.f32 0.0, %v155
  %157 = vdwg.mxu0
  %158 = vmatprep.subr.mxu0 0.0
  %159 = vmatpush1.msra.mxu0 0.0
  %160 = vmatprep.subr.mxu0 0.0
  %161 = vmatpush1.msra.mxu0 0.0
  %162 = vmatprep.subr.mxu0 0.0
  %163 = vmatpush1.msra.mxu0 0.0
  %164 = vmatprep.subr.mxu0 0.0
  %165 = vmatpush1.msra.mxu0 0.0
  %166 = vmatprep.subr.mxu0 0.0
  %167 = vmatpush1.msra.mxu0 0.0
  %168 = vmatprep.subr.mxu0 0.0
  %169 = vmatpush1.msra.mxu0 0.0
  %170 = vmatprep.subr.mxu0 0.0
  %171 = vmatpush1.msra.mxu0 0.0
  %172 = vmatprep.subr.mxu0 0.0
  %173 = vmatpush1.msra.mxu0 0.0
  %174 = vmatprep.subr.mxu0 0.0
  %175 = vmatpush1.msra.mxu0 0.0
  %176 = vmatprep.subr.mxu0 0.0
  %177 = vmatpush1.msra.mxu0 0.0
  %v178 = vand.u32 %v48, 4294901760
  %v179 = vsub.f32 %v48, %v178
  %v180 = vand.u32 %v179, 4294901760
  %v181 = vsub.f32 %v179, %v180
  %v182 = vand.u32 %v181, 4294901760
  %183 = vmatprep.subr.mxu0 %v182
  %v184 = vand.u32 %v47, 4294901760
  %v185 = vsub.f32 %v47, %v184
  %v186 = vand.u32 %v185, 4294901760
  %v187 = vsub.f32 %v185, %v186
  %v188 = vand.u32 %v187, 4294901760
  %189 = vmatpush1.msra.mxu0 %v188
  %v190 = vand.u32 %v43, 4294901760
  %v191 = vsub.f32 %v43, %v190
  %v192 = vand.u32 %v191, 4294901760
  %v193 = vsub.f32 %v191, %v192
  %v194 = vand.u32 %v193, 4294901760
  %195 = vmatprep.subr.mxu0 %v194
  %v196 = vand.u32 %v42, 4294901760
  %v197 = vsub.f32 %v42, %v196
  %v198 = vand.u32 %v197, 4294901760
  %v199 = vsub.f32 %v197, %v198
  %v200 = vand.u32 %v199, 4294901760
  %201 = vmatpush1.msra.mxu0 %v200
  %v202 = vand.u32 %v38, 4294901760
  %v203 = vsub.f32 %v38, %v202
  %v204 = vand.u32 %v203, 4294901760
  %v205 = vsub.f32 %v203, %v204
  %v206 = vand.u32 %v205, 4294901760
  %207 = vmatprep.subr.mxu0 %v206
  %v208 = vand.u32 %v37, 4294901760
  %v209 = vsub.f32 %v37, %v208
  %v210 = vand.u32 %v209, 4294901760
  %v211 = vsub.f32 %v209, %v210
  %v212 = vand.u32 %v211, 4294901760
  %213 = vmatpush1.msra.mxu0 %v212
  %v214 = vand.u32 %v33, 4294901760
  %v215 = vsub.f32 %v33, %v214
  %v216 = vand.u32 %v215, 4294901760
  %v217 = vsub.f32 %v215, %v216
  %v218 = vand.u32 %v217, 4294901760
  %219 = vmatprep.subr.mxu0 %v218
  %v220 = vand.u32 %v32, 4294901760
  %v221 = vsub.f32 %v32, %v220
  %v222 = vand.u32 %v221, 4294901760
  %v223 = vsub.f32 %v221, %v222
  %v224 = vand.u32 %v223, 4294901760
  %225 = vmatpush1.msra.mxu0 %v224
  %v226 = vand.u32 %v28, 4294901760
  %v227 = vsub.f32 %v28, %v226
  %v228 = vand.u32 %v227, 4294901760
  %v229 = vsub.f32 %v227, %v228
  %v230 = vand.u32 %v229, 4294901760
  %231 = vmatprep.subr.mxu0 %v230
  %v232 = vand.u32 %v27, 4294901760
  %v233 = vsub.f32 %v27, %v232
  %v234 = vand.u32 %v233, 4294901760
  %v235 = vsub.f32 %v233, %v234
  %v236 = vand.u32 %v235, 4294901760
  %237 = vmatpush1.msra.mxu0 %v236
  %v238 = vand.u32 %v23, 4294901760
  %v239 = vsub.f32 %v23, %v238
  %v240 = vand.u32 %v239, 4294901760
  %v241 = vsub.f32 %v239, %v240
  %v242 = vand.u32 %v241, 4294901760
  %243 = vmatprep.subr.mxu0 %v242
  %v244 = vand.u32 %v22, 4294901760
  %v245 = vsub.f32 %v22, %v244
  %v246 = vand.u32 %v245, 4294901760
  %v247 = vsub.f32 %v245, %v246
  %v248 = vand.u32 %v247, 4294901760
  %249 = vmatpush1.msra.mxu0 %v248
  %250 = vmatprep.subr.mxu0 0.0
  %251 = vmatpush2.msra.mxu0 0.0
  %252 = vmatprep.subr.mxu0 0.0
  %253 = vmatpush2.msra.mxu0 0.0
  %254 = vmatprep.subr.mxu0 0.0
  %255 = vmatpush2.msra.mxu0 0.0
  %256 = vmatprep.subr.mxu0 0.0
  %257 = vmatpush2.msra.mxu0 0.0
  %258 = vmatprep.subr.mxu0 0.0
  %259 = vmatpush2.msra.mxu0 0.0
  %260 = vmatprep.subr.mxu0 0.0
  %261 = vmatpush2.msra.mxu0 0.0
  %262 = vmatprep.subr.mxu0 0.0
  %263 = vmatpush2.msra.mxu0 0.0
  %264 = vmatprep.subr.mxu0 0.0
  %265 = vmatpush2.msra.mxu0 0.0
  %266 = vmatprep.subr.mxu0 0.0
  %267 = vmatpush2.msra.mxu0 0.0
  %268 = vmatprep.subr.mxu0 0.0
  %269 = vmatpush2.msra.mxu0 0.0
  %270 = vmatprep.subr.mxu0 0.0
  %271 = vmatpush2.msra.mxu0 0.0
  %272 = vmatprep.subr.mxu0 0.0
  %273 = vmatpush2.msra.mxu0 0.0
  %274 = vmatprep.subr.mxu0 0.0
  %275 = vmatpush2.msra.mxu0 0.0
  %276 = vmatprep.subr.mxu0 0.0
  %277 = vmatpush2.msra.mxu0 0.0
  %278 = vmatprep.subr.mxu0 0.0
  %279 = vmatpush2.msra.mxu0 0.0
  %280 = vmatprep.subr.mxu0 0.0
  %281 = vmatpush2.msra.mxu0 0.0
  %282 = vmatprep.mubr.f32.mxu0 0.0
  %v283 = vand.u32 %v54, 4294901760
  %284 = vmatmul.mubr.f32.gmra.mxu0 %v283
  %v285 = vpop.f32.mrf.mxu0
  %v286 = vadd.f32 %v143, %v285
  %v287 = vpop.f32.mrf.mxu0
  %v288 = vadd.f32 %v145, %v287
  %289 = vmatprep.mubr.f32.mxu0 0.0
  %v290 = vand.u32 %v57, 4294901760
  %291 = vmatmul.mubr.f32.gmra.mxu0 %v290
  %v292 = vpop.f32.mrf.mxu0
  %v293 = vadd.f32 %v154, %v292
  %v294 = vpop.f32.mrf.mxu0
  %v295 = vadd.f32 %v156, %v294
  %296 = vdwg.mxu0
  %297 = vmatprep.subr.mxu0 0.0
  %298 = vmatpush1.msra.mxu0 0.0
  %299 = vmatprep.subr.mxu0 0.0
  %300 = vmatpush1.msra.mxu0 0.0
  %301 = vmatprep.subr.mxu0 0.0
  %302 = vmatpush1.msra.mxu0 0.0
  %303 = vmatprep.subr.mxu0 0.0
  %304 = vmatpush1.msra.mxu0 0.0
  %305 = vmatprep.subr.mxu0 0.0
  %306 = vmatpush1.msra.mxu0 0.0
  %307 = vmatprep.subr.mxu0 0.0
  %308 = vmatpush1.msra.mxu0 0.0
  %309 = vmatprep.subr.mxu0 0.0
  %310 = vmatpush1.msra.mxu0 0.0
  %311 = vmatprep.subr.mxu0 0.0
  %312 = vmatpush1.msra.mxu0 0.0
  %313 = vmatprep.subr.mxu0 0.0
  %314 = vmatpush1.msra.mxu0 0.0
  %315 = vmatprep.subr.mxu0 0.0
  %316 = vmatpush1.msra.mxu0 0.0
  %v317 = vand.u32 %v48, 4294901760
  %v318 = vsub.f32 %v48, %v317
  %319 = vmatprep.subr.mxu0 %v318
  %v320 = vand.u32 %v47, 4294901760
  %v321 = vsub.f32 %v47, %v320
  %322 = vmatpush1.msra.mxu0 %v321
  %v323 = vand.u32 %v43, 4294901760
  %v324 = vsub.f32 %v43, %v323
  %325 = vmatprep.subr.mxu0 %v324
  %v326 = vand.u32 %v42, 4294901760
  %v327 = vsub.f32 %v42, %v326
  %328 = vmatpush1.msra.mxu0 %v327
  %v329 = vand.u32 %v38, 4294901760
  %v330 = vsub.f32 %v38, %v329
  %331 = vmatprep.subr.mxu0 %v330
  %v332 = vand.u32 %v37, 4294901760
  %v333 = vsub.f32 %v37, %v332
  %334 = vmatpush1.msra.mxu0 %v333
  %v335 = vand.u32 %v33, 4294901760
  %v336 = vsub.f32 %v33, %v335
  %337 = vmatprep.subr.mxu0 %v336
  %v338 = vand.u32 %v32, 4294901760
  %v339 = vsub.f32 %v32, %v338
  %340 = vmatpush1.msra.mxu0 %v339
  %v341 = vand.u32 %v28, 4294901760
  %v342 = vsub.f32 %v28, %v341
  %343 = vmatprep.subr.mxu0 %v342
  %v344 = vand.u32 %v27, 4294901760
  %v345 = vsub.f32 %v27, %v344
  %346 = vmatpush1.msra.mxu0 %v345
  %v347 = vand.u32 %v23, 4294901760
  %v348 = vsub.f32 %v23, %v347
  %349 = vmatprep.subr.mxu0 %v348
  %v350 = vand.u32 %v22, 4294901760
  %v351 = vsub.f32 %v22, %v350
  %352 = vmatpush1.msra.mxu0 %v351
  %353 = vmatprep.subr.mxu0 0.0
  %354 = vmatpush2.msra.mxu0 0.0
  %355 = vmatprep.subr.mxu0 0.0
  %356 = vmatpush2.msra.mxu0 0.0
  %357 = vmatprep.subr.mxu0 0.0
  %358 = vmatpush2.msra.mxu0 0.0
  %359 = vmatprep.subr.mxu0 0.0
  %360 = vmatpush2.msra.mxu0 0.0
  %361 = vmatprep.subr.mxu0 0.0
  %362 = vmatpush2.msra.mxu0 0.0
  %363 = vmatprep.subr.mxu0 0.0
  %364 = vmatpush2.msra.mxu0 0.0
  %365 = vmatprep.subr.mxu0 0.0
  %366 = vmatpush2.msra.mxu0 0.0
  %367 = vmatprep.subr.mxu0 0.0
  %368 = vmatpush2.msra.mxu0 0.0
  %369 = vmatprep.subr.mxu0 0.0
  %370 = vmatpush2.msra.mxu0 0.0
  %371 = vmatprep.subr.mxu0 0.0
  %372 = vmatpush2.msra.mxu0 0.0
  %373 = vmatprep.subr.mxu0 0.0
  %374 = vmatpush2.msra.mxu0 0.0
  %375 = vmatprep.subr.mxu0 0.0
  %376 = vmatpush2.msra.mxu0 0.0
  %377 = vmatprep.subr.mxu0 0.0
  %378 = vmatpush2.msra.mxu0 0.0
  %379 = vmatprep.subr.mxu0 0.0
  %380 = vmatpush2.msra.mxu0 0.0
  %381 = vmatprep.subr.mxu0 0.0
  %382 = vmatpush2.msra.mxu0 0.0
  %383 = vmatprep.subr.mxu0 0.0
  %384 = vmatpush2.msra.mxu0 0.0
  %385 = vmatprep.mubr.f32.mxu0 0.0
  %v386 = vand.u32 %v54, 4294901760
  %v387 = vsub.f32 %v54, %v386
  %388 = vmatmul.mubr.f32.gmra.mxu0 %v387
  %v389 = vpop.f32.mrf.mxu0
  %v390 = vadd.f32 %v286, %v389
  %v391 = vpop.f32.mrf.mxu0
  %v392 = vadd.f32 %v288, %v391
  %393 = vmatprep.mubr.f32.mxu0 0.0
  %v394 = vand.u32 %v57, 4294901760
  %v395 = vsub.f32 %v57, %v394
  %396 = vmatmul.mubr.f32.gmra.mxu0 %v395
  %v397 = vpop.f32.mrf.mxu0
  %v398 = vadd.f32 %v293, %v397
  %v399 = vpop.f32.mrf.mxu0
  %v400 = vadd.f32 %v295, %v399
  %401 = vdwg.mxu0
  %402 = vmatprep.subr.mxu0 0.0
  %403 = vmatpush1.msra.mxu0 0.0
  %404 = vmatprep.subr.mxu0 0.0
  %405 = vmatpush1.msra.mxu0 0.0
  %406 = vmatprep.subr.mxu0 0.0
  %407 = vmatpush1.msra.mxu0 0.0
  %408 = vmatprep.subr.mxu0 0.0
  %409 = vmatpush1.msra.mxu0 0.0
  %410 = vmatprep.subr.mxu0 0.0
  %411 = vmatpush1.msra.mxu0 0.0
  %412 = vmatprep.subr.mxu0 0.0
  %413 = vmatpush1.msra.mxu0 0.0
  %414 = vmatprep.subr.mxu0 0.0
  %415 = vmatpush1.msra.mxu0 0.0
  %416 = vmatprep.subr.mxu0 0.0
  %417 = vmatpush1.msra.mxu0 0.0
  %418 = vmatprep.subr.mxu0 0.0
  %419 = vmatpush1.msra.mxu0 0.0
  %420 = vmatprep.subr.mxu0 0.0
  %421 = vmatpush1.msra.mxu0 0.0
  %v422 = vand.u32 %v48, 4294901760
  %423 = vmatprep.subr.mxu0 %v422
  %v424 = vand.u32 %v47, 4294901760
  %425 = vmatpush1.msra.mxu0 %v424
  %v426 = vand.u32 %v43, 4294901760
  %427 = vmatprep.subr.mxu0 %v426
  %v428 = vand.u32 %v42, 4294901760
  %429 = vmatpush1.msra.mxu0 %v428
  %v430 = vand.u32 %v38, 4294901760
  %431 = vmatprep.subr.mxu0 %v430
  %v432 = vand.u32 %v37, 4294901760
  %433 = vmatpush1.msra.mxu0 %v432
  %v434 = vand.u32 %v33, 4294901760
  %435 = vmatprep.subr.mxu0 %v434
  %v436 = vand.u32 %v32, 4294901760
  %437 = vmatpush1.msra.mxu0 %v436
  %v438 = vand.u32 %v28, 4294901760
  %439 = vmatprep.subr.mxu0 %v438
  %v440 = vand.u32 %v27, 4294901760
  %441 = vmatpush1.msra.mxu0 %v440
  %v442 = vand.u32 %v23, 4294901760
  %443 = vmatprep.subr.mxu0 %v442
  %v444 = vand.u32 %v22, 4294901760
  %445 = vmatpush1.msra.mxu0 %v444
  %446 = vmatprep.subr.mxu0 0.0
  %447 = vmatpush2.msra.mxu0 0.0
  %448 = vmatprep.subr.mxu0 0.0
  %449 = vmatpush2.msra.mxu0 0.0
  %450 = vmatprep.subr.mxu0 0.0
  %451 = vmatpush2.msra.mxu0 0.0
  %452 = vmatprep.subr.mxu0 0.0
  %453 = vmatpush2.msra.mxu0 0.0
  %454 = vmatprep.subr.mxu0 0.0
  %455 = vmatpush2.msra.mxu0 0.0
  %456 = vmatprep.subr.mxu0 0.0
  %457 = vmatpush2.msra.mxu0 0.0
  %458 = vmatprep.subr.mxu0 0.0
  %459 = vmatpush2.msra.mxu0 0.0
  %460 = vmatprep.subr.mxu0 0.0
  %461 = vmatpush2.msra.mxu0 0.0
  %462 = vmatprep.subr.mxu0 0.0
  %463 = vmatpush2.msra.mxu0 0.0
  %464 = vmatprep.subr.mxu0 0.0
  %465 = vmatpush2.msra.mxu0 0.0
  %466 = vmatprep.subr.mxu0 0.0
  %467 = vmatpush2.msra.mxu0 0.0
  %468 = vmatprep.subr.mxu0 0.0
  %469 = vmatpush2.msra.mxu0 0.0
  %470 = vmatprep.subr.mxu0 0.0
  %471 = vmatpush2.msra.mxu0 0.0
  %472 = vmatprep.subr.mxu0 0.0
  %473 = vmatpush2.msra.mxu0 0.0
  %474 = vmatprep.subr.mxu0 0.0
  %475 = vmatpush2.msra.mxu0 0.0
  %476 = vmatprep.subr.mxu0 0.0
  %477 = vmatpush2.msra.mxu0 0.0
  %478 = vmatprep.mubr.f32.mxu0 0.0
  %v479 = vand.u32 %v54, 4294901760
  %v480 = vsub.f32 %v54, %v479
  %v481 = vand.u32 %v480, 4294901760
  %482 = vmatmul.mubr.f32.gmra.mxu0 %v481
  %v483 = vpop.f32.mrf.mxu0
  %v484 = vadd.f32 %v390, %v483
  %v485 = vpop.f32.mrf.mxu0
  %v486 = vadd.f32 %v392, %v485
  %487 = vmatprep.mubr.f32.mxu0 0.0
  %v488 = vand.u32 %v57, 4294901760
  %v489 = vsub.f32 %v57, %v488
  %v490 = vand.u32 %v489, 4294901760
  %491 = vmatmul.mubr.f32.gmra.mxu0 %v490
  %v492 = vpop.f32.mrf.mxu0
  %v493 = vadd.f32 %v398, %v492
  %v494 = vpop.f32.mrf.mxu0
  %v495 = vadd.f32 %v400, %v494
  %496 = vdwg.mxu0
  %497 = vmatprep.subr.mxu0 0.0
  %498 = vmatpush1.msra.mxu0 0.0
  %499 = vmatprep.subr.mxu0 0.0
  %500 = vmatpush1.msra.mxu0 0.0
  %501 = vmatprep.subr.mxu0 0.0
  %502 = vmatpush1.msra.mxu0 0.0
  %503 = vmatprep.subr.mxu0 0.0
  %504 = vmatpush1.msra.mxu0 0.0
  %505 = vmatprep.subr.mxu0 0.0
  %506 = vmatpush1.msra.mxu0 0.0
  %507 = vmatprep.subr.mxu0 0.0
  %508 = vmatpush1.msra.mxu0 0.0
  %509 = vmatprep.subr.mxu0 0.0
  %510 = vmatpush1.msra.mxu0 0.0
  %511 = vmatprep.subr.mxu0 0.0
  %512 = vmatpush1.msra.mxu0 0.0
  %513 = vmatprep.subr.mxu0 0.0
  %514 = vmatpush1.msra.mxu0 0.0
  %515 = vmatprep.subr.mxu0 0.0
  %516 = vmatpush1.msra.mxu0 0.0
  %v517 = vand.u32 %v48, 4294901760
  %v518 = vsub.f32 %v48, %v517
  %v519 = vand.u32 %v518, 4294901760
  %520 = vmatprep.subr.mxu0 %v519
  %v521 = vand.u32 %v47, 4294901760
  %v522 = vsub.f32 %v47, %v521
  %v523 = vand.u32 %v522, 4294901760
  %524 = vmatpush1.msra.mxu0 %v523
  %v525 = vand.u32 %v43, 4294901760
  %v526 = vsub.f32 %v43, %v525
  %v527 = vand.u32 %v526, 4294901760
  %528 = vmatprep.subr.mxu0 %v527
  %v529 = vand.u32 %v42, 4294901760
  %v530 = vsub.f32 %v42, %v529
  %v531 = vand.u32 %v530, 4294901760
  %532 = vmatpush1.msra.mxu0 %v531
  %v533 = vand.u32 %v38, 4294901760
  %v534 = vsub.f32 %v38, %v533
  %v535 = vand.u32 %v534, 4294901760
  %536 = vmatprep.subr.mxu0 %v535
  %v537 = vand.u32 %v37, 4294901760
  %v538 = vsub.f32 %v37, %v537
  %v539 = vand.u32 %v538, 4294901760
  %540 = vmatpush1.msra.mxu0 %v539
  %v541 = vand.u32 %v33, 4294901760
  %v542 = vsub.f32 %v33, %v541
  %v543 = vand.u32 %v542, 4294901760
  %544 = vmatprep.subr.mxu0 %v543
  %v545 = vand.u32 %v32, 4294901760
  %v546 = vsub.f32 %v32, %v545
  %v547 = vand.u32 %v546, 4294901760
  %548 = vmatpush1.msra.mxu0 %v547
  %v549 = vand.u32 %v28, 4294901760
  %v550 = vsub.f32 %v28, %v549
  %v551 = vand.u32 %v550, 4294901760
  %552 = vmatprep.subr.mxu0 %v551
  %v553 = vand.u32 %v27, 4294901760
  %v554 = vsub.f32 %v27, %v553
  %v555 = vand.u32 %v554, 4294901760
  %556 = vmatpush1.msra.mxu0 %v555
  %v557 = vand.u32 %v23, 4294901760
  %v558 = vsub.f32 %v23, %v557
  %v559 = vand.u32 %v558, 4294901760
  %560 = vmatprep.subr.mxu0 %v559
  %v561 = vand.u32 %v22, 4294901760
  %v562 = vsub.f32 %v22, %v561
  %v563 = vand.u32 %v562, 4294901760
  %564 = vmatpush1.msra.mxu0 %v563
  %565 = vmatprep.subr.mxu0 0.0
  %566 = vmatpush2.msra.mxu0 0.0
  %567 = vmatprep.subr.mxu0 0.0
  %568 = vmatpush2.msra.mxu0 0.0
  %569 = vmatprep.subr.mxu0 0.0
  %570 = vmatpush2.msra.mxu0 0.0
  %571 = vmatprep.subr.mxu0 0.0
  %572 = vmatpush2.msra.mxu0 0.0
  %573 = vmatprep.subr.mxu0 0.0
  %574 = vmatpush2.msra.mxu0 0.0
  %575 = vmatprep.subr.mxu0 0.0
  %576 = vmatpush2.msra.mxu0 0.0
  %577 = vmatprep.subr.mxu0 0.0
  %578 = vmatpush2.msra.mxu0 0.0
  %579 = vmatprep.subr.mxu0 0.0
  %580 = vmatpush2.msra.mxu0 0.0
  %581 = vmatprep.subr.mxu0 0.0
  %582 = vmatpush2.msra.mxu0 0.0
  %583 = vmatprep.subr.mxu0 0.0
  %584 = vmatpush2.msra.mxu0 0.0
  %585 = vmatprep.subr.mxu0 0.0
  %586 = vmatpush2.msra.mxu0 0.0
  %587 = vmatprep.subr.mxu0 0.0
  %588 = vmatpush2.msra.mxu0 0.0
  %589 = vmatprep.subr.mxu0 0.0
  %590 = vmatpush2.msra.mxu0 0.0
  %591 = vmatprep.subr.mxu0 0.0
  %592 = vmatpush2.msra.mxu0 0.0
  %593 = vmatprep.subr.mxu0 0.0
  %594 = vmatpush2.msra.mxu0 0.0
  %595 = vmatprep.subr.mxu0 0.0
  %596 = vmatpush2.msra.mxu0 0.0
  %597 = vmatprep.mubr.f32.mxu0 0.0
  %v598 = vand.u32 %v54, 4294901760
  %599 = vmatmul.mubr.f32.gmra.mxu0 %v598
  %v600 = vpop.f32.mrf.mxu0
  %v601 = vadd.f32 %v484, %v600
  %v602 = vpop.f32.mrf.mxu0
  %v603 = vadd.f32 %v486, %v602
  %604 = vmatprep.mubr.f32.mxu0 0.0
  %v605 = vand.u32 %v57, 4294901760
  %606 = vmatmul.mubr.f32.gmra.mxu0 %v605
  %v607 = vpop.f32.mrf.mxu0
  %v608 = vadd.f32 %v493, %v607
  %v609 = vpop.f32.mrf.mxu0
  %v610 = vadd.f32 %v495, %v609
  %611 = vdwg.mxu0
  %612 = vmatprep.subr.mxu0 0.0
  %613 = vmatpush1.msra.mxu0 0.0
  %614 = vmatprep.subr.mxu0 0.0
  %615 = vmatpush1.msra.mxu0 0.0
  %616 = vmatprep.subr.mxu0 0.0
  %617 = vmatpush1.msra.mxu0 0.0
  %618 = vmatprep.subr.mxu0 0.0
  %619 = vmatpush1.msra.mxu0 0.0
  %620 = vmatprep.subr.mxu0 0.0
  %621 = vmatpush1.msra.mxu0 0.0
  %622 = vmatprep.subr.mxu0 0.0
  %623 = vmatpush1.msra.mxu0 0.0
  %624 = vmatprep.subr.mxu0 0.0
  %625 = vmatpush1.msra.mxu0 0.0
  %626 = vmatprep.subr.mxu0 0.0
  %627 = vmatpush1.msra.mxu0 0.0
  %628 = vmatprep.subr.mxu0 0.0
  %629 = vmatpush1.msra.mxu0 0.0
  %630 = vmatprep.subr.mxu0 0.0
  %631 = vmatpush1.msra.mxu0 0.0
  %v632 = vand.u32 %v48, 4294901760
  %633 = vmatprep.subr.mxu0 %v632
  %v634 = vand.u32 %v47, 4294901760
  %635 = vmatpush1.msra.mxu0 %v634
  %v636 = vand.u32 %v43, 4294901760
  %637 = vmatprep.subr.mxu0 %v636
  %v638 = vand.u32 %v42, 4294901760
  %639 = vmatpush1.msra.mxu0 %v638
  %v640 = vand.u32 %v38, 4294901760
  %641 = vmatprep.subr.mxu0 %v640
  %v642 = vand.u32 %v37, 4294901760
  %643 = vmatpush1.msra.mxu0 %v642
  %v644 = vand.u32 %v33, 4294901760
  %645 = vmatprep.subr.mxu0 %v644
  %v646 = vand.u32 %v32, 4294901760
  %647 = vmatpush1.msra.mxu0 %v646
  %v648 = vand.u32 %v28, 4294901760
  %649 = vmatprep.subr.mxu0 %v648
  %v650 = vand.u32 %v27, 4294901760
  %651 = vmatpush1.msra.mxu0 %v650
  %v652 = vand.u32 %v23, 4294901760
  %653 = vmatprep.subr.mxu0 %v652
  %v654 = vand.u32 %v22, 4294901760
  %655 = vmatpush1.msra.mxu0 %v654
  %656 = vmatprep.subr.mxu0 0.0
  %657 = vmatpush2.msra.mxu0 0.0
  %658 = vmatprep.subr.mxu0 0.0
  %659 = vmatpush2.msra.mxu0 0.0
  %660 = vmatprep.subr.mxu0 0.0
  %661 = vmatpush2.msra.mxu0 0.0
  %662 = vmatprep.subr.mxu0 0.0
  %663 = vmatpush2.msra.mxu0 0.0
  %664 = vmatprep.subr.mxu0 0.0
  %665 = vmatpush2.msra.mxu0 0.0
  %666 = vmatprep.subr.mxu0 0.0
  %667 = vmatpush2.msra.mxu0 0.0
  %668 = vmatprep.subr.mxu0 0.0
  %669 = vmatpush2.msra.mxu0 0.0
  %670 = vmatprep.subr.mxu0 0.0
  %671 = vmatpush2.msra.mxu0 0.0
  %672 = vmatprep.subr.mxu0 0.0
  %673 = vmatpush2.msra.mxu0 0.0
  %674 = vmatprep.subr.mxu0 0.0
  %675 = vmatpush2.msra.mxu0 0.0
  %676 = vmatprep.subr.mxu0 0.0
  %677 = vmatpush2.msra.mxu0 0.0
  %678 = vmatprep.subr.mxu0 0.0
  %679 = vmatpush2.msra.mxu0 0.0
  %680 = vmatprep.subr.mxu0 0.0
  %681 = vmatpush2.msra.mxu0 0.0
  %682 = vmatprep.subr.mxu0 0.0
  %683 = vmatpush2.msra.mxu0 0.0
  %684 = vmatprep.subr.mxu0 0.0
  %685 = vmatpush2.msra.mxu0 0.0
  %686 = vmatprep.subr.mxu0 0.0
  %687 = vmatpush2.msra.mxu0 0.0
  %688 = vmatprep.mubr.f32.mxu0 0.0
  %v689 = vand.u32 %v54, 4294901760
  %690 = vmatmul.mubr.f32.gmra.mxu0 %v689
  %v691 = vpop.f32.mrf.mxu0
  %v692 = vadd.f32 %v601, %v691
  %v693 = vpop.f32.mrf.mxu0
  %v694 = vadd.f32 %v603, %v693
  %695 = vmatprep.mubr.f32.mxu0 0.0
  %v696 = vand.u32 %v57, 4294901760
  %697 = vmatmul.mubr.f32.gmra.mxu0 %v696
  %v698 = vpop.f32.mrf.mxu0
  %v699 = vadd.f32 %v608, %v698
  %v700 = vpop.f32.mrf.mxu0
  %v701 = vadd.f32 %v610, %v700
  %702 = vdwg.mxu0
  %703 = vmatprep.subr.mxu0 0.0
  %704 = vmatpush1.msra.mxu0 0.0
  %705 = vmatprep.subr.mxu0 0.0
  %706 = vmatpush1.msra.mxu0 0.0
  %707 = vmatprep.subr.mxu0 0.0
  %708 = vmatpush1.msra.mxu0 0.0
  %709 = vmatprep.subr.mxu0 0.0
  %710 = vmatpush1.msra.mxu0 0.0
  %711 = vmatprep.subr.mxu0 0.0
  %712 = vmatpush1.msra.mxu0 0.0
  %713 = vmatprep.subr.mxu0 0.0
  %714 = vmatpush1.msra.mxu0 0.0
  %715 = vmatprep.subr.mxu0 0.0
  %716 = vmatpush1.msra.mxu0 0.0
  %717 = vmatprep.subr.mxu0 0.0
  %718 = vmatpush1.msra.mxu0 0.0
  %719 = vmatprep.subr.mxu0 0.0
  %720 = vmatpush1.msra.mxu0 0.0
  %721 = vmatprep.subr.mxu0 0.0
  %722 = vmatpush1.msra.mxu0 0.0
  %v723 = vand.u32 %v50, 4294901760
  %724 = vmatprep.subr.mxu0 %v723
  %v725 = vand.u32 %v49, 4294901760
  %726 = vmatpush1.msra.mxu0 %v725
  %v727 = vand.u32 %v45, 4294901760
  %728 = vmatprep.subr.mxu0 %v727
  %v729 = vand.u32 %v44, 4294901760
  %730 = vmatpush1.msra.mxu0 %v729
  %v731 = vand.u32 %v40, 4294901760
  %732 = vmatprep.subr.mxu0 %v731
  %v733 = vand.u32 %v39, 4294901760
  %734 = vmatpush1.msra.mxu0 %v733
  %v735 = vand.u32 %v35, 4294901760
  %736 = vmatprep.subr.mxu0 %v735
  %v737 = vand.u32 %v34, 4294901760
  %738 = vmatpush1.msra.mxu0 %v737
  %v739 = vand.u32 %v30, 4294901760
  %740 = vmatprep.subr.mxu0 %v739
  %v741 = vand.u32 %v29, 4294901760
  %742 = vmatpush1.msra.mxu0 %v741
  %v743 = vand.u32 %v25, 4294901760
  %744 = vmatprep.subr.mxu0 %v743
  %v745 = vand.u32 %v24, 4294901760
  %746 = vmatpush1.msra.mxu0 %v745
  %747 = vmatprep.subr.mxu0 0.0
  %748 = vmatpush2.msra.mxu0 0.0
  %749 = vmatprep.subr.mxu0 0.0
  %750 = vmatpush2.msra.mxu0 0.0
  %751 = vmatprep.subr.mxu0 0.0
  %752 = vmatpush2.msra.mxu0 0.0
  %753 = vmatprep.subr.mxu0 0.0
  %754 = vmatpush2.msra.mxu0 0.0
  %755 = vmatprep.subr.mxu0 0.0
  %756 = vmatpush2.msra.mxu0 0.0
  %757 = vmatprep.subr.mxu0 0.0
  %758 = vmatpush2.msra.mxu0 0.0
  %759 = vmatprep.subr.mxu0 0.0
  %760 = vmatpush2.msra.mxu0 0.0
  %761 = vmatprep.subr.mxu0 0.0
  %762 = vmatpush2.msra.mxu0 0.0
  %763 = vmatprep.subr.mxu0 0.0
  %764 = vmatpush2.msra.mxu0 0.0
  %765 = vmatprep.subr.mxu0 0.0
  %766 = vmatpush2.msra.mxu0 0.0
  %767 = vmatprep.subr.mxu0 0.0
  %768 = vmatpush2.msra.mxu0 0.0
  %769 = vmatprep.subr.mxu0 0.0
  %770 = vmatpush2.msra.mxu0 0.0
  %771 = vmatprep.subr.mxu0 0.0
  %772 = vmatpush2.msra.mxu0 0.0
  %773 = vmatprep.subr.mxu0 0.0
  %774 = vmatpush2.msra.mxu0 0.0
  %775 = vmatprep.subr.mxu0 0.0
  %776 = vmatpush2.msra.mxu0 0.0
  %777 = vmatprep.subr.mxu0 0.0
  %778 = vmatpush2.msra.mxu0 0.0
  %779 = vmatprep.mubr.f32.mxu0 0.0
  %v780 = vand.u32 %v54, 4294901760
  %v781 = vsub.f32 %v54, %v780
  %v782 = vand.u32 %v781, 4294901760
  %v783 = vsub.f32 %v781, %v782
  %v784 = vand.u32 %v783, 4294901760
  %785 = vmatmul.mubr.f32.gmra.mxu0 %v784
  %v786 = vpop.f32.mrf.mxu0
  %v787 = vadd.f32 0.0, %v786
  %v788 = vpop.f32.mrf.mxu0
  %v789 = vadd.f32 0.0, %v788
  %790 = vmatprep.mubr.f32.mxu0 0.0
  %v791 = vand.u32 %v57, 4294901760
  %v792 = vsub.f32 %v57, %v791
  %v793 = vand.u32 %v792, 4294901760
  %v794 = vsub.f32 %v792, %v793
  %v795 = vand.u32 %v794, 4294901760
  %796 = vmatmul.mubr.f32.gmra.mxu0 %v795
  %v797 = vpop.f32.mrf.mxu0
  %v798 = vadd.f32 0.0, %v797
  %v799 = vpop.f32.mrf.mxu0
  %v800 = vadd.f32 0.0, %v799
  %801 = vdwg.mxu0
  %802 = vmatprep.subr.mxu0 0.0
  %803 = vmatpush1.msra.mxu0 0.0
  %804 = vmatprep.subr.mxu0 0.0
  %805 = vmatpush1.msra.mxu0 0.0
  %806 = vmatprep.subr.mxu0 0.0
  %807 = vmatpush1.msra.mxu0 0.0
  %808 = vmatprep.subr.mxu0 0.0
  %809 = vmatpush1.msra.mxu0 0.0
  %810 = vmatprep.subr.mxu0 0.0
  %811 = vmatpush1.msra.mxu0 0.0
  %812 = vmatprep.subr.mxu0 0.0
  %813 = vmatpush1.msra.mxu0 0.0
  %814 = vmatprep.subr.mxu0 0.0
  %815 = vmatpush1.msra.mxu0 0.0
  %816 = vmatprep.subr.mxu0 0.0
  %817 = vmatpush1.msra.mxu0 0.0
  %818 = vmatprep.subr.mxu0 0.0
  %819 = vmatpush1.msra.mxu0 0.0
  %820 = vmatprep.subr.mxu0 0.0
  %821 = vmatpush1.msra.mxu0 0.0
  %v822 = vand.u32 %v50, 4294901760
  %v823 = vsub.f32 %v50, %v822
  %v824 = vand.u32 %v823, 4294901760
  %v825 = vsub.f32 %v823, %v824
  %v826 = vand.u32 %v825, 4294901760
  %827 = vmatprep.subr.mxu0 %v826
  %v828 = vand.u32 %v49, 4294901760
  %v829 = vsub.f32 %v49, %v828
  %v830 = vand.u32 %v829, 4294901760
  %v831 = vsub.f32 %v829, %v830
  %v832 = vand.u32 %v831, 4294901760
  %833 = vmatpush1.msra.mxu0 %v832
  %v834 = vand.u32 %v45, 4294901760
  %v835 = vsub.f32 %v45, %v834
  %v836 = vand.u32 %v835, 4294901760
  %v837 = vsub.f32 %v835, %v836
  %v838 = vand.u32 %v837, 4294901760
  %839 = vmatprep.subr.mxu0 %v838
  %v840 = vand.u32 %v44, 4294901760
  %v841 = vsub.f32 %v44, %v840
  %v842 = vand.u32 %v841, 4294901760
  %v843 = vsub.f32 %v841, %v842
  %v844 = vand.u32 %v843, 4294901760
  %845 = vmatpush1.msra.mxu0 %v844
  %v846 = vand.u32 %v40, 4294901760
  %v847 = vsub.f32 %v40, %v846
  %v848 = vand.u32 %v847, 4294901760
  %v849 = vsub.f32 %v847, %v848
  %v850 = vand.u32 %v849, 4294901760
  %851 = vmatprep.subr.mxu0 %v850
  %v852 = vand.u32 %v39, 4294901760
  %v853 = vsub.f32 %v39, %v852
  %v854 = vand.u32 %v853, 4294901760
  %v855 = vsub.f32 %v853, %v854
  %v856 = vand.u32 %v855, 4294901760
  %857 = vmatpush1.msra.mxu0 %v856
  %v858 = vand.u32 %v35, 4294901760
  %v859 = vsub.f32 %v35, %v858
  %v860 = vand.u32 %v859, 4294901760
  %v861 = vsub.f32 %v859, %v860
  %v862 = vand.u32 %v861, 4294901760
  %863 = vmatprep.subr.mxu0 %v862
  %v864 = vand.u32 %v34, 4294901760
  %v865 = vsub.f32 %v34, %v864
  %v866 = vand.u32 %v865, 4294901760
  %v867 = vsub.f32 %v865, %v866
  %v868 = vand.u32 %v867, 4294901760
  %869 = vmatpush1.msra.mxu0 %v868
  %v870 = vand.u32 %v30, 4294901760
  %v871 = vsub.f32 %v30, %v870
  %v872 = vand.u32 %v871, 4294901760
  %v873 = vsub.f32 %v871, %v872
  %v874 = vand.u32 %v873, 4294901760
  %875 = vmatprep.subr.mxu0 %v874
  %v876 = vand.u32 %v29, 4294901760
  %v877 = vsub.f32 %v29, %v876
  %v878 = vand.u32 %v877, 4294901760
  %v879 = vsub.f32 %v877, %v878
  %v880 = vand.u32 %v879, 4294901760
  %881 = vmatpush1.msra.mxu0 %v880
  %v882 = vand.u32 %v25, 4294901760
  %v883 = vsub.f32 %v25, %v882
  %v884 = vand.u32 %v883, 4294901760
  %v885 = vsub.f32 %v883, %v884
  %v886 = vand.u32 %v885, 4294901760
  %887 = vmatprep.subr.mxu0 %v886
  %v888 = vand.u32 %v24, 4294901760
  %v889 = vsub.f32 %v24, %v888
  %v890 = vand.u32 %v889, 4294901760
  %v891 = vsub.f32 %v889, %v890
  %v892 = vand.u32 %v891, 4294901760
  %893 = vmatpush1.msra.mxu0 %v892
  %894 = vmatprep.subr.mxu0 0.0
  %895 = vmatpush2.msra.mxu0 0.0
  %896 = vmatprep.subr.mxu0 0.0
  %897 = vmatpush2.msra.mxu0 0.0
  %898 = vmatprep.subr.mxu0 0.0
  %899 = vmatpush2.msra.mxu0 0.0
  %900 = vmatprep.subr.mxu0 0.0
  %901 = vmatpush2.msra.mxu0 0.0
  %902 = vmatprep.subr.mxu0 0.0
  %903 = vmatpush2.msra.mxu0 0.0
  %904 = vmatprep.subr.mxu0 0.0
  %905 = vmatpush2.msra.mxu0 0.0
  %906 = vmatprep.subr.mxu0 0.0
  %907 = vmatpush2.msra.mxu0 0.0
  %908 = vmatprep.subr.mxu0 0.0
  %909 = vmatpush2.msra.mxu0 0.0
  %910 = vmatprep.subr.mxu0 0.0
  %911 = vmatpush2.msra.mxu0 0.0
  %912 = vmatprep.subr.mxu0 0.0
  %913 = vmatpush2.msra.mxu0 0.0
  %914 = vmatprep.subr.mxu0 0.0
  %915 = vmatpush2.msra.mxu0 0.0
  %916 = vmatprep.subr.mxu0 0.0
  %917 = vmatpush2.msra.mxu0 0.0
  %918 = vmatprep.subr.mxu0 0.0
  %919 = vmatpush2.msra.mxu0 0.0
  %920 = vmatprep.subr.mxu0 0.0
  %921 = vmatpush2.msra.mxu0 0.0
  %922 = vmatprep.subr.mxu0 0.0
  %923 = vmatpush2.msra.mxu0 0.0
  %924 = vmatprep.subr.mxu0 0.0
  %925 = vmatpush2.msra.mxu0 0.0
  %926 = vmatprep.mubr.f32.mxu0 0.0
  %v927 = vand.u32 %v54, 4294901760
  %928 = vmatmul.mubr.f32.gmra.mxu0 %v927
  %v929 = vpop.f32.mrf.mxu0
  %v930 = vadd.f32 %v787, %v929
  %v931 = vpop.f32.mrf.mxu0
  %v932 = vadd.f32 %v789, %v931
  %933 = vmatprep.mubr.f32.mxu0 0.0
  %v934 = vand.u32 %v57, 4294901760
  %935 = vmatmul.mubr.f32.gmra.mxu0 %v934
  %v936 = vpop.f32.mrf.mxu0
  %v937 = vadd.f32 %v798, %v936
  %v938 = vpop.f32.mrf.mxu0
  %v939 = vadd.f32 %v800, %v938
  %940 = vdwg.mxu0
  %941 = vmatprep.subr.mxu0 0.0
  %942 = vmatpush1.msra.mxu0 0.0
  %943 = vmatprep.subr.mxu0 0.0
  %944 = vmatpush1.msra.mxu0 0.0
  %945 = vmatprep.subr.mxu0 0.0
  %946 = vmatpush1.msra.mxu0 0.0
  %947 = vmatprep.subr.mxu0 0.0
  %948 = vmatpush1.msra.mxu0 0.0
  %949 = vmatprep.subr.mxu0 0.0
  %950 = vmatpush1.msra.mxu0 0.0
  %951 = vmatprep.subr.mxu0 0.0
  %952 = vmatpush1.msra.mxu0 0.0
  %953 = vmatprep.subr.mxu0 0.0
  %954 = vmatpush1.msra.mxu0 0.0
  %955 = vmatprep.subr.mxu0 0.0
  %956 = vmatpush1.msra.mxu0 0.0
  %957 = vmatprep.subr.mxu0 0.0
  %958 = vmatpush1.msra.mxu0 0.0
  %959 = vmatprep.subr.mxu0 0.0
  %960 = vmatpush1.msra.mxu0 0.0
  %v961 = vand.u32 %v50, 4294901760
  %v962 = vsub.f32 %v50, %v961
  %963 = vmatprep.subr.mxu0 %v962
  %v964 = vand.u32 %v49, 4294901760
  %v965 = vsub.f32 %v49, %v964
  %966 = vmatpush1.msra.mxu0 %v965
  %v967 = vand.u32 %v45, 4294901760
  %v968 = vsub.f32 %v45, %v967
  %969 = vmatprep.subr.mxu0 %v968
  %v970 = vand.u32 %v44, 4294901760
  %v971 = vsub.f32 %v44, %v970
  %972 = vmatpush1.msra.mxu0 %v971
  %v973 = vand.u32 %v40, 4294901760
  %v974 = vsub.f32 %v40, %v973
  %975 = vmatprep.subr.mxu0 %v974
  %v976 = vand.u32 %v39, 4294901760
  %v977 = vsub.f32 %v39, %v976
  %978 = vmatpush1.msra.mxu0 %v977
  %v979 = vand.u32 %v35, 4294901760
  %v980 = vsub.f32 %v35, %v979
  %981 = vmatprep.subr.mxu0 %v980
  %v982 = vand.u32 %v34, 4294901760
  %v983 = vsub.f32 %v34, %v982
  %984 = vmatpush1.msra.mxu0 %v983
  %v985 = vand.u32 %v30, 4294901760
  %v986 = vsub.f32 %v30, %v985
  %987 = vmatprep.subr.mxu0 %v986
  %v988 = vand.u32 %v29, 4294901760
  %v989 = vsub.f32 %v29, %v988
  %990 = vmatpush1.msra.mxu0 %v989
  %v991 = vand.u32 %v25, 4294901760
  %v992 = vsub.f32 %v25, %v991
  %993 = vmatprep.subr.mxu0 %v992
  %v994 = vand.u32 %v24, 4294901760
  %v995 = vsub.f32 %v24, %v994
  %996 = vmatpush1.msra.mxu0 %v995
  %997 = vmatprep.subr.mxu0 0.0
  %998 = vmatpush2.msra.mxu0 0.0
  %999 = vmatprep.subr.mxu0 0.0
  %1000 = vmatpush2.msra.mxu0 0.0
  %1001 = vmatprep.subr.mxu0 0.0
  %1002 = vmatpush2.msra.mxu0 0.0
  %1003 = vmatprep.subr.mxu0 0.0
  %1004 = vmatpush2.msra.mxu0 0.0
  %1005 = vmatprep.subr.mxu0 0.0
  %1006 = vmatpush2.msra.mxu0 0.0
  %1007 = vmatprep.subr.mxu0 0.0
  %1008 = vmatpush2.msra.mxu0 0.0
  %1009 = vmatprep.subr.mxu0 0.0
  %1010 = vmatpush2.msra.mxu0 0.0
  %1011 = vmatprep.subr.mxu0 0.0
  %1012 = vmatpush2.msra.mxu0 0.0
  %1013 = vmatprep.subr.mxu0 0.0
  %1014 = vmatpush2.msra.mxu0 0.0
  %1015 = vmatprep.subr.mxu0 0.0
  %1016 = vmatpush2.msra.mxu0 0.0
  %1017 = vmatprep.subr.mxu0 0.0
  %1018 = vmatpush2.msra.mxu0 0.0
  %1019 = vmatprep.subr.mxu0 0.0
  %1020 = vmatpush2.msra.mxu0 0.0
  %1021 = vmatprep.subr.mxu0 0.0
  %1022 = vmatpush2.msra.mxu0 0.0
  %1023 = vmatprep.subr.mxu0 0.0
  %1024 = vmatpush2.msra.mxu0 0.0
  %1025 = vmatprep.subr.mxu0 0.0
  %1026 = vmatpush2.msra.mxu0 0.0
  %1027 = vmatprep.subr.mxu0 0.0
  %1028 = vmatpush2.msra.mxu0 0.0
  %1029 = vmatprep.mubr.f32.mxu0 0.0
  %v1030 = vand.u32 %v54, 4294901760
  %v1031 = vsub.f32 %v54, %v1030
  %1032 = vmatmul.mubr.f32.gmra.mxu0 %v1031
  %v1033 = vpop.f32.mrf.mxu0
  %v1034 = vadd.f32 %v930, %v1033
  %v1035 = vpop.f32.mrf.mxu0
  %v1036 = vadd.f32 %v932, %v1035
  %1037 = vmatprep.mubr.f32.mxu0 0.0
  %v1038 = vand.u32 %v57, 4294901760
  %v1039 = vsub.f32 %v57, %v1038
  %1040 = vmatmul.mubr.f32.gmra.mxu0 %v1039
  %v1041 = vpop.f32.mrf.mxu0
  %v1042 = vadd.f32 %v937, %v1041
  %v1043 = vpop.f32.mrf.mxu0
  %v1044 = vadd.f32 %v939, %v1043
  %1045 = vdwg.mxu0
  %1046 = vmatprep.subr.mxu0 0.0
  %1047 = vmatpush1.msra.mxu0 0.0
  %1048 = vmatprep.subr.mxu0 0.0
  %1049 = vmatpush1.msra.mxu0 0.0
  %1050 = vmatprep.subr.mxu0 0.0
  %1051 = vmatpush1.msra.mxu0 0.0
  %1052 = vmatprep.subr.mxu0 0.0
  %1053 = vmatpush1.msra.mxu0 0.0
  %1054 = vmatprep.subr.mxu0 0.0
  %1055 = vmatpush1.msra.mxu0 0.0
  %1056 = vmatprep.subr.mxu0 0.0
  %1057 = vmatpush1.msra.mxu0 0.0
  %1058 = vmatprep.subr.mxu0 0.0
  %1059 = vmatpush1.msra.mxu0 0.0
  %1060 = vmatprep.subr.mxu0 0.0
  %1061 = vmatpush1.msra.mxu0 0.0
  %1062 = vmatprep.subr.mxu0 0.0
  %1063 = vmatpush1.msra.mxu0 0.0
  %1064 = vmatprep.subr.mxu0 0.0
  %1065 = vmatpush1.msra.mxu0 0.0
  %v1066 = vand.u32 %v50, 4294901760
  %1067 = vmatprep.subr.mxu0 %v1066
  %v1068 = vand.u32 %v49, 4294901760
  %1069 = vmatpush1.msra.mxu0 %v1068
  %v1070 = vand.u32 %v45, 4294901760
  %1071 = vmatprep.subr.mxu0 %v1070
  %v1072 = vand.u32 %v44, 4294901760
  %1073 = vmatpush1.msra.mxu0 %v1072
  %v1074 = vand.u32 %v40, 4294901760
  %1075 = vmatprep.subr.mxu0 %v1074
  %v1076 = vand.u32 %v39, 4294901760
  %1077 = vmatpush1.msra.mxu0 %v1076
  %v1078 = vand.u32 %v35, 4294901760
  %1079 = vmatprep.subr.mxu0 %v1078
  %v1080 = vand.u32 %v34, 4294901760
  %1081 = vmatpush1.msra.mxu0 %v1080
  %v1082 = vand.u32 %v30, 4294901760
  %1083 = vmatprep.subr.mxu0 %v1082
  %v1084 = vand.u32 %v29, 4294901760
  %1085 = vmatpush1.msra.mxu0 %v1084
  %v1086 = vand.u32 %v25, 4294901760
  %1087 = vmatprep.subr.mxu0 %v1086
  %v1088 = vand.u32 %v24, 4294901760
  %1089 = vmatpush1.msra.mxu0 %v1088
  %1090 = vmatprep.subr.mxu0 0.0
  %1091 = vmatpush2.msra.mxu0 0.0
  %1092 = vmatprep.subr.mxu0 0.0
  %1093 = vmatpush2.msra.mxu0 0.0
  %1094 = vmatprep.subr.mxu0 0.0
  %1095 = vmatpush2.msra.mxu0 0.0
  %1096 = vmatprep.subr.mxu0 0.0
  %1097 = vmatpush2.msra.mxu0 0.0
  %1098 = vmatprep.subr.mxu0 0.0
  %1099 = vmatpush2.msra.mxu0 0.0
  %1100 = vmatprep.subr.mxu0 0.0
  %1101 = vmatpush2.msra.mxu0 0.0
  %1102 = vmatprep.subr.mxu0 0.0
  %1103 = vmatpush2.msra.mxu0 0.0
  %1104 = vmatprep.subr.mxu0 0.0
  %1105 = vmatpush2.msra.mxu0 0.0
  %1106 = vmatprep.subr.mxu0 0.0
  %1107 = vmatpush2.msra.mxu0 0.0
  %1108 = vmatprep.subr.mxu0 0.0
  %1109 = vmatpush2.msra.mxu0 0.0
  %1110 = vmatprep.subr.mxu0 0.0
  %1111 = vmatpush2.msra.mxu0 0.0
  %1112 = vmatprep.subr.mxu0 0.0
  %1113 = vmatpush2.msra.mxu0 0.0
  %1114 = vmatprep.subr.mxu0 0.0
  %1115 = vmatpush2.msra.mxu0 0.0
  %1116 = vmatprep.subr.mxu0 0.0
  %1117 = vmatpush2.msra.mxu0 0.0
  %1118 = vmatprep.subr.mxu0 0.0
  %1119 = vmatpush2.msra.mxu0 0.0
  %1120 = vmatprep.subr.mxu0 0.0
  %1121 = vmatpush2.msra.mxu0 0.0
  %1122 = vmatprep.mubr.f32.mxu0 0.0
  %v1123 = vand.u32 %v54, 4294901760
  %v1124 = vsub.f32 %v54, %v1123
  %v1125 = vand.u32 %v1124, 4294901760
  %1126 = vmatmul.mubr.f32.gmra.mxu0 %v1125
  %v1127 = vpop.f32.mrf.mxu0
  %v1128 = vadd.f32 %v1034, %v1127
  %v1129 = vpop.f32.mrf.mxu0
  %v1130 = vadd.f32 %v1036, %v1129
  %1131 = vmatprep.mubr.f32.mxu0 0.0
  %v1132 = vand.u32 %v57, 4294901760
  %v1133 = vsub.f32 %v57, %v1132
  %v1134 = vand.u32 %v1133, 4294901760
  %1135 = vmatmul.mubr.f32.gmra.mxu0 %v1134
  %v1136 = vpop.f32.mrf.mxu0
  %v1137 = vadd.f32 %v1042, %v1136
  %v1138 = vpop.f32.mrf.mxu0
  %v1139 = vadd.f32 %v1044, %v1138
  %1140 = vdwg.mxu0
  %1141 = vmatprep.subr.mxu0 0.0
  %1142 = vmatpush1.msra.mxu0 0.0
  %1143 = vmatprep.subr.mxu0 0.0
  %1144 = vmatpush1.msra.mxu0 0.0
  %1145 = vmatprep.subr.mxu0 0.0
  %1146 = vmatpush1.msra.mxu0 0.0
  %1147 = vmatprep.subr.mxu0 0.0
  %1148 = vmatpush1.msra.mxu0 0.0
  %1149 = vmatprep.subr.mxu0 0.0
  %1150 = vmatpush1.msra.mxu0 0.0
  %1151 = vmatprep.subr.mxu0 0.0
  %1152 = vmatpush1.msra.mxu0 0.0
  %1153 = vmatprep.subr.mxu0 0.0
  %1154 = vmatpush1.msra.mxu0 0.0
  %1155 = vmatprep.subr.mxu0 0.0
  %1156 = vmatpush1.msra.mxu0 0.0
  %1157 = vmatprep.subr.mxu0 0.0
  %1158 = vmatpush1.msra.mxu0 0.0
  %1159 = vmatprep.subr.mxu0 0.0
  %1160 = vmatpush1.msra.mxu0 0.0
  %v1161 = vand.u32 %v50, 4294901760
  %v1162 = vsub.f32 %v50, %v1161
  %v1163 = vand.u32 %v1162, 4294901760
  %1164 = vmatprep.subr.mxu0 %v1163
  %v1165 = vand.u32 %v49, 4294901760
  %v1166 = vsub.f32 %v49, %v1165
  %v1167 = vand.u32 %v1166, 4294901760
  %1168 = vmatpush1.msra.mxu0 %v1167
  %v1169 = vand.u32 %v45, 4294901760
  %v1170 = vsub.f32 %v45, %v1169
  %v1171 = vand.u32 %v1170, 4294901760
  %1172 = vmatprep.subr.mxu0 %v1171
  %v1173 = vand.u32 %v44, 4294901760
  %v1174 = vsub.f32 %v44, %v1173
  %v1175 = vand.u32 %v1174, 4294901760
  %1176 = vmatpush1.msra.mxu0 %v1175
  %v1177 = vand.u32 %v40, 4294901760
  %v1178 = vsub.f32 %v40, %v1177
  %v1179 = vand.u32 %v1178, 4294901760
  %1180 = vmatprep.subr.mxu0 %v1179
  %v1181 = vand.u32 %v39, 4294901760
  %v1182 = vsub.f32 %v39, %v1181
  %v1183 = vand.u32 %v1182, 4294901760
  %1184 = vmatpush1.msra.mxu0 %v1183
  %v1185 = vand.u32 %v35, 4294901760
  %v1186 = vsub.f32 %v35, %v1185
  %v1187 = vand.u32 %v1186, 4294901760
  %1188 = vmatprep.subr.mxu0 %v1187
  %v1189 = vand.u32 %v34, 4294901760
  %v1190 = vsub.f32 %v34, %v1189
  %v1191 = vand.u32 %v1190, 4294901760
  %1192 = vmatpush1.msra.mxu0 %v1191
  %v1193 = vand.u32 %v30, 4294901760
  %v1194 = vsub.f32 %v30, %v1193
  %v1195 = vand.u32 %v1194, 4294901760
  %1196 = vmatprep.subr.mxu0 %v1195
  %v1197 = vand.u32 %v29, 4294901760
  %v1198 = vsub.f32 %v29, %v1197
  %v1199 = vand.u32 %v1198, 4294901760
  %1200 = vmatpush1.msra.mxu0 %v1199
  %v1201 = vand.u32 %v25, 4294901760
  %v1202 = vsub.f32 %v25, %v1201
  %v1203 = vand.u32 %v1202, 4294901760
  %1204 = vmatprep.subr.mxu0 %v1203
  %v1205 = vand.u32 %v24, 4294901760
  %v1206 = vsub.f32 %v24, %v1205
  %v1207 = vand.u32 %v1206, 4294901760
  %1208 = vmatpush1.msra.mxu0 %v1207
  %1209 = vmatprep.subr.mxu0 0.0
  %1210 = vmatpush2.msra.mxu0 0.0
  %1211 = vmatprep.subr.mxu0 0.0
  %1212 = vmatpush2.msra.mxu0 0.0
  %1213 = vmatprep.subr.mxu0 0.0
  %1214 = vmatpush2.msra.mxu0 0.0
  %1215 = vmatprep.subr.mxu0 0.0
  %1216 = vmatpush2.msra.mxu0 0.0
  %1217 = vmatprep.subr.mxu0 0.0
  %1218 = vmatpush2.msra.mxu0 0.0
  %1219 = vmatprep.subr.mxu0 0.0
  %1220 = vmatpush2.msra.mxu0 0.0
  %1221 = vmatprep.subr.mxu0 0.0
  %1222 = vmatpush2.msra.mxu0 0.0
  %1223 = vmatprep.subr.mxu0 0.0
  %1224 = vmatpush2.msra.mxu0 0.0
  %1225 = vmatprep.subr.mxu0 0.0
  %1226 = vmatpush2.msra.mxu0 0.0
  %1227 = vmatprep.subr.mxu0 0.0
  %1228 = vmatpush2.msra.mxu0 0.0
  %1229 = vmatprep.subr.mxu0 0.0
  %1230 = vmatpush2.msra.mxu0 0.0
  %1231 = vmatprep.subr.mxu0 0.0
  %1232 = vmatpush2.msra.mxu0 0.0
  %1233 = vmatprep.subr.mxu0 0.0
  %1234 = vmatpush2.msra.mxu0 0.0
  %1235 = vmatprep.subr.mxu0 0.0
  %1236 = vmatpush2.msra.mxu0 0.0
  %1237 = vmatprep.subr.mxu0 0.0
  %1238 = vmatpush2.msra.mxu0 0.0
  %1239 = vmatprep.subr.mxu0 0.0
  %1240 = vmatpush2.msra.mxu0 0.0
  %1241 = vmatprep.mubr.f32.mxu0 0.0
  %v1242 = vand.u32 %v54, 4294901760
  %1243 = vmatmul.mubr.f32.gmra.mxu0 %v1242
  %v1244 = vpop.f32.mrf.mxu0
  %v1245 = vadd.f32 %v1128, %v1244
  %v1246 = vpop.f32.mrf.mxu0
  %v1247 = vadd.f32 %v1130, %v1246
  %1248 = vmatprep.mubr.f32.mxu0 0.0
  %v1249 = vand.u32 %v57, 4294901760
  %1250 = vmatmul.mubr.f32.gmra.mxu0 %v1249
  %v1251 = vpop.f32.mrf.mxu0
  %v1252 = vadd.f32 %v1137, %v1251
  %v1253 = vpop.f32.mrf.mxu0
  %v1254 = vadd.f32 %v1139, %v1253
  %1255 = vdwg.mxu0
  %1256 = vmatprep.subr.mxu0 0.0
  %1257 = vmatpush1.msra.mxu0 0.0
  %1258 = vmatprep.subr.mxu0 0.0
  %1259 = vmatpush1.msra.mxu0 0.0
  %1260 = vmatprep.subr.mxu0 0.0
  %1261 = vmatpush1.msra.mxu0 0.0
  %1262 = vmatprep.subr.mxu0 0.0
  %1263 = vmatpush1.msra.mxu0 0.0
  %1264 = vmatprep.subr.mxu0 0.0
  %1265 = vmatpush1.msra.mxu0 0.0
  %1266 = vmatprep.subr.mxu0 0.0
  %1267 = vmatpush1.msra.mxu0 0.0
  %1268 = vmatprep.subr.mxu0 0.0
  %1269 = vmatpush1.msra.mxu0 0.0
  %1270 = vmatprep.subr.mxu0 0.0
  %1271 = vmatpush1.msra.mxu0 0.0
  %1272 = vmatprep.subr.mxu0 0.0
  %1273 = vmatpush1.msra.mxu0 0.0
  %1274 = vmatprep.subr.mxu0 0.0
  %1275 = vmatpush1.msra.mxu0 0.0
  %v1276 = vand.u32 %v50, 4294901760
  %1277 = vmatprep.subr.mxu0 %v1276
  %v1278 = vand.u32 %v49, 4294901760
  %1279 = vmatpush1.msra.mxu0 %v1278
  %v1280 = vand.u32 %v45, 4294901760
  %1281 = vmatprep.subr.mxu0 %v1280
  %v1282 = vand.u32 %v44, 4294901760
  %1283 = vmatpush1.msra.mxu0 %v1282
  %v1284 = vand.u32 %v40, 4294901760
  %1285 = vmatprep.subr.mxu0 %v1284
  %v1286 = vand.u32 %v39, 4294901760
  %1287 = vmatpush1.msra.mxu0 %v1286
  %v1288 = vand.u32 %v35, 4294901760
  %1289 = vmatprep.subr.mxu0 %v1288
  %v1290 = vand.u32 %v34, 4294901760
  %1291 = vmatpush1.msra.mxu0 %v1290
  %v1292 = vand.u32 %v30, 4294901760
  %1293 = vmatprep.subr.mxu0 %v1292
  %v1294 = vand.u32 %v29, 4294901760
  %1295 = vmatpush1.msra.mxu0 %v1294
  %v1296 = vand.u32 %v25, 4294901760
  %1297 = vmatprep.subr.mxu0 %v1296
  %v1298 = vand.u32 %v24, 4294901760
  %1299 = vmatpush1.msra.mxu0 %v1298
  %1300 = vmatprep.subr.mxu0 0.0
  %1301 = vmatpush2.msra.mxu0 0.0
  %1302 = vmatprep.subr.mxu0 0.0
  %1303 = vmatpush2.msra.mxu0 0.0
  %1304 = vmatprep.subr.mxu0 0.0
  %1305 = vmatpush2.msra.mxu0 0.0
  %1306 = vmatprep.subr.mxu0 0.0
  %1307 = vmatpush2.msra.mxu0 0.0
  %1308 = vmatprep.subr.mxu0 0.0
  %1309 = vmatpush2.msra.mxu0 0.0
  %1310 = vmatprep.subr.mxu0 0.0
  %1311 = vmatpush2.msra.mxu0 0.0
  %1312 = vmatprep.subr.mxu0 0.0
  %1313 = vmatpush2.msra.mxu0 0.0
  %1314 = vmatprep.subr.mxu0 0.0
  %1315 = vmatpush2.msra.mxu0 0.0
  %1316 = vmatprep.subr.mxu0 0.0
  %1317 = vmatpush2.msra.mxu0 0.0
  %1318 = vmatprep.subr.mxu0 0.0
  %1319 = vmatpush2.msra.mxu0 0.0
  %1320 = vmatprep.subr.mxu0 0.0
  %1321 = vmatpush2.msra.mxu0 0.0
  %1322 = vmatprep.subr.mxu0 0.0
  %1323 = vmatpush2.msra.mxu0 0.0
  %1324 = vmatprep.subr.mxu0 0.0
  %1325 = vmatpush2.msra.mxu0 0.0
  %1326 = vmatprep.subr.mxu0 0.0
  %1327 = vmatpush2.msra.mxu0 0.0
  %1328 = vmatprep.subr.mxu0 0.0
  %1329 = vmatpush2.msra.mxu0 0.0
  %1330 = vmatprep.subr.mxu0 0.0
  %1331 = vmatpush2.msra.mxu0 0.0
  %1332 = vmatprep.mubr.f32.mxu0 0.0
  %v1333 = vand.u32 %v54, 4294901760
  %1334 = vmatmul.mubr.f32.gmra.mxu0 %v1333
  %v1335 = vpop.f32.mrf.mxu0
  %v1336 = vadd.f32 %v1245, %v1335
  %v1337 = vpop.f32.mrf.mxu0
  %v1338 = vadd.f32 %v1247, %v1337
  %1339 = vmatprep.mubr.f32.mxu0 0.0
  %v1340 = vand.u32 %v57, 4294901760
  %1341 = vmatmul.mubr.f32.gmra.mxu0 %v1340
  %v1342 = vpop.f32.mrf.mxu0
  %v1343 = vadd.f32 %v1252, %v1342
  %v1344 = vpop.f32.mrf.mxu0
  %v1345 = vadd.f32 %v1254, %v1344
  %1346 = vdwg.mxu0
  %1347 = vmatprep.subr.mxu0 0.0
  %1348 = vmatpush1.msra.mxu0 0.0
  %1349 = vmatprep.subr.mxu0 0.0
  %1350 = vmatpush1.msra.mxu0 0.0
  %1351 = vmatprep.subr.mxu0 0.0
  %1352 = vmatpush1.msra.mxu0 0.0
  %1353 = vmatprep.subr.mxu0 0.0
  %1354 = vmatpush1.msra.mxu0 0.0
  %1355 = vmatprep.subr.mxu0 0.0
  %1356 = vmatpush1.msra.mxu0 0.0
  %1357 = vmatprep.subr.mxu0 0.0
  %1358 = vmatpush1.msra.mxu0 0.0
  %1359 = vmatprep.subr.mxu0 0.0
  %1360 = vmatpush1.msra.mxu0 0.0
  %1361 = vmatprep.subr.mxu0 0.0
  %1362 = vmatpush1.msra.mxu0 0.0
  %1363 = vmatprep.subr.mxu0 0.0
  %1364 = vmatpush1.msra.mxu0 0.0
  %1365 = vmatprep.subr.mxu0 0.0
  %1366 = vmatpush1.msra.mxu0 0.0
  %1367 = vmatprep.subr.mxu0 0.0
  %v1368 = vand.u32 %v51, 4294901760
  %1369 = vmatpush1.msra.mxu0 %v1368
  %1370 = vmatprep.subr.mxu0 0.0
  %v1371 = vand.u32 %v46, 4294901760
  %1372 = vmatpush1.msra.mxu0 %v1371
  %1373 = vmatprep.subr.mxu0 0.0
  %v1374 = vand.u32 %v41, 4294901760
  %1375 = vmatpush1.msra.mxu0 %v1374
  %1376 = vmatprep.subr.mxu0 0.0
  %v1377 = vand.u32 %v36, 4294901760
  %1378 = vmatpush1.msra.mxu0 %v1377
  %1379 = vmatprep.subr.mxu0 0.0
  %v1380 = vand.u32 %v31, 4294901760
  %1381 = vmatpush1.msra.mxu0 %v1380
  %1382 = vmatprep.subr.mxu0 0.0
  %v1383 = vand.u32 %v26, 4294901760
  %1384 = vmatpush1.msra.mxu0 %v1383
  %1385 = vmatprep.subr.mxu0 0.0
  %1386 = vmatpush2.msra.mxu0 0.0
  %1387 = vmatprep.subr.mxu0 0.0
  %1388 = vmatpush2.msra.mxu0 0.0
  %1389 = vmatprep.subr.mxu0 0.0
  %1390 = vmatpush2.msra.mxu0 0.0
  %1391 = vmatprep.subr.mxu0 0.0
  %1392 = vmatpush2.msra.mxu0 0.0
  %1393 = vmatprep.subr.mxu0 0.0
  %1394 = vmatpush2.msra.mxu0 0.0
  %1395 = vmatprep.subr.mxu0 0.0
  %1396 = vmatpush2.msra.mxu0 0.0
  %1397 = vmatprep.subr.mxu0 0.0
  %1398 = vmatpush2.msra.mxu0 0.0
  %1399 = vmatprep.subr.mxu0 0.0
  %1400 = vmatpush2.msra.mxu0 0.0
  %1401 = vmatprep.subr.mxu0 0.0
  %1402 = vmatpush2.msra.mxu0 0.0
  %1403 = vmatprep.subr.mxu0 0.0
  %1404 = vmatpush2.msra.mxu0 0.0
  %1405 = vmatprep.subr.mxu0 0.0
  %1406 = vmatpush2.msra.mxu0 0.0
  %1407 = vmatprep.subr.mxu0 0.0
  %1408 = vmatpush2.msra.mxu0 0.0
  %1409 = vmatprep.subr.mxu0 0.0
  %1410 = vmatpush2.msra.mxu0 0.0
  %1411 = vmatprep.subr.mxu0 0.0
  %1412 = vmatpush2.msra.mxu0 0.0
  %1413 = vmatprep.subr.mxu0 0.0
  %1414 = vmatpush2.msra.mxu0 0.0
  %1415 = vmatprep.subr.mxu0 0.0
  %1416 = vmatpush2.msra.mxu0 0.0
  %1417 = vmatprep.mubr.f32.mxu0 0.0
  %v1418 = vand.u32 %v54, 4294901760
  %v1419 = vsub.f32 %v54, %v1418
  %v1420 = vand.u32 %v1419, 4294901760
  %v1421 = vsub.f32 %v1419, %v1420
  %v1422 = vand.u32 %v1421, 4294901760
  %1423 = vmatmul.mubr.f32.gmra.mxu0 %v1422
  %v1424 = vpop.f32.mrf.mxu0
  %v1425 = vadd.f32 0.0, %v1424
  %v1426 = vpop.f32.mrf.mxu0
  %1427 = vmatprep.mubr.f32.mxu0 0.0
  %v1428 = vand.u32 %v57, 4294901760
  %v1429 = vsub.f32 %v57, %v1428
  %v1430 = vand.u32 %v1429, 4294901760
  %v1431 = vsub.f32 %v1429, %v1430
  %v1432 = vand.u32 %v1431, 4294901760
  %1433 = vmatmul.mubr.f32.gmra.mxu0 %v1432
  %v1434 = vpop.f32.mrf.mxu0
  %v1435 = vadd.f32 0.0, %v1434
  %v1436 = vpop.f32.mrf.mxu0
  %1437 = vdwg.mxu0
  %1438 = vmatprep.subr.mxu0 0.0
  %1439 = vmatpush1.msra.mxu0 0.0
  %1440 = vmatprep.subr.mxu0 0.0
  %1441 = vmatpush1.msra.mxu0 0.0
  %1442 = vmatprep.subr.mxu0 0.0
  %1443 = vmatpush1.msra.mxu0 0.0
  %1444 = vmatprep.subr.mxu0 0.0
  %1445 = vmatpush1.msra.mxu0 0.0
  %1446 = vmatprep.subr.mxu0 0.0
  %1447 = vmatpush1.msra.mxu0 0.0
  %1448 = vmatprep.subr.mxu0 0.0
  %1449 = vmatpush1.msra.mxu0 0.0
  %1450 = vmatprep.subr.mxu0 0.0
  %1451 = vmatpush1.msra.mxu0 0.0
  %1452 = vmatprep.subr.mxu0 0.0
  %1453 = vmatpush1.msra.mxu0 0.0
  %1454 = vmatprep.subr.mxu0 0.0
  %1455 = vmatpush1.msra.mxu0 0.0
  %1456 = vmatprep.subr.mxu0 0.0
  %1457 = vmatpush1.msra.mxu0 0.0
  %1458 = vmatprep.subr.mxu0 0.0
  %v1459 = vand.u32 %v51, 4294901760
  %v1460 = vsub.f32 %v51, %v1459
  %v1461 = vand.u32 %v1460, 4294901760
  %v1462 = vsub.f32 %v1460, %v1461
  %v1463 = vand.u32 %v1462, 4294901760
  %1464 = vmatpush1.msra.mxu0 %v1463
  %1465 = vmatprep.subr.mxu0 0.0
  %v1466 = vand.u32 %v46, 4294901760
  %v1467 = vsub.f32 %v46, %v1466
  %v1468 = vand.u32 %v1467, 4294901760
  %v1469 = vsub.f32 %v1467, %v1468
  %v1470 = vand.u32 %v1469, 4294901760
  %1471 = vmatpush1.msra.mxu0 %v1470
  %1472 = vmatprep.subr.mxu0 0.0
  %v1473 = vand.u32 %v41, 4294901760
  %v1474 = vsub.f32 %v41, %v1473
  %v1475 = vand.u32 %v1474, 4294901760
  %v1476 = vsub.f32 %v1474, %v1475
  %v1477 = vand.u32 %v1476, 4294901760
  %1478 = vmatpush1.msra.mxu0 %v1477
  %1479 = vmatprep.subr.mxu0 0.0
  %v1480 = vand.u32 %v36, 4294901760
  %v1481 = vsub.f32 %v36, %v1480
  %v1482 = vand.u32 %v1481, 4294901760
  %v1483 = vsub.f32 %v1481, %v1482
  %v1484 = vand.u32 %v1483, 4294901760
  %1485 = vmatpush1.msra.mxu0 %v1484
  %1486 = vmatprep.subr.mxu0 0.0
  %v1487 = vand.u32 %v31, 4294901760
  %v1488 = vsub.f32 %v31, %v1487
  %v1489 = vand.u32 %v1488, 4294901760
  %v1490 = vsub.f32 %v1488, %v1489
  %v1491 = vand.u32 %v1490, 4294901760
  %1492 = vmatpush1.msra.mxu0 %v1491
  %1493 = vmatprep.subr.mxu0 0.0
  %v1494 = vand.u32 %v26, 4294901760
  %v1495 = vsub.f32 %v26, %v1494
  %v1496 = vand.u32 %v1495, 4294901760
  %v1497 = vsub.f32 %v1495, %v1496
  %v1498 = vand.u32 %v1497, 4294901760
  %1499 = vmatpush1.msra.mxu0 %v1498
  %1500 = vmatprep.subr.mxu0 0.0
  %1501 = vmatpush2.msra.mxu0 0.0
  %1502 = vmatprep.subr.mxu0 0.0
  %1503 = vmatpush2.msra.mxu0 0.0
  %1504 = vmatprep.subr.mxu0 0.0
  %1505 = vmatpush2.msra.mxu0 0.0
  %1506 = vmatprep.subr.mxu0 0.0
  %1507 = vmatpush2.msra.mxu0 0.0
  %1508 = vmatprep.subr.mxu0 0.0
  %1509 = vmatpush2.msra.mxu0 0.0
  %1510 = vmatprep.subr.mxu0 0.0
  %1511 = vmatpush2.msra.mxu0 0.0
  %1512 = vmatprep.subr.mxu0 0.0
  %1513 = vmatpush2.msra.mxu0 0.0
  %1514 = vmatprep.subr.mxu0 0.0
  %1515 = vmatpush2.msra.mxu0 0.0
  %1516 = vmatprep.subr.mxu0 0.0
  %1517 = vmatpush2.msra.mxu0 0.0
  %1518 = vmatprep.subr.mxu0 0.0
  %1519 = vmatpush2.msra.mxu0 0.0
  %1520 = vmatprep.subr.mxu0 0.0
  %1521 = vmatpush2.msra.mxu0 0.0
  %1522 = vmatprep.subr.mxu0 0.0
  %1523 = vmatpush2.msra.mxu0 0.0
  %1524 = vmatprep.subr.mxu0 0.0
  %1525 = vmatpush2.msra.mxu0 0.0
  %1526 = vmatprep.subr.mxu0 0.0
  %1527 = vmatpush2.msra.mxu0 0.0
  %1528 = vmatprep.subr.mxu0 0.0
  %1529 = vmatpush2.msra.mxu0 0.0
  %1530 = vmatprep.subr.mxu0 0.0
  %1531 = vmatpush2.msra.mxu0 0.0
  %1532 = vmatprep.mubr.f32.mxu0 0.0
  %v1533 = vand.u32 %v54, 4294901760
  %1534 = vmatmul.mubr.f32.gmra.mxu0 %v1533
  %v1535 = vpop.f32.mrf.mxu0
  %v1536 = vadd.f32 %v1425, %v1535
  %v1537 = vpop.f32.mrf.mxu0
  %1538 = vmatprep.mubr.f32.mxu0 0.0
  %v1539 = vand.u32 %v57, 4294901760
  %1540 = vmatmul.mubr.f32.gmra.mxu0 %v1539
  %v1541 = vpop.f32.mrf.mxu0
  %v1542 = vadd.f32 %v1435, %v1541
  %v1543 = vpop.f32.mrf.mxu0
  %1544 = vdwg.mxu0
  %1545 = vmatprep.subr.mxu0 0.0
  %1546 = vmatpush1.msra.mxu0 0.0
  %1547 = vmatprep.subr.mxu0 0.0
  %1548 = vmatpush1.msra.mxu0 0.0
  %1549 = vmatprep.subr.mxu0 0.0
  %1550 = vmatpush1.msra.mxu0 0.0
  %1551 = vmatprep.subr.mxu0 0.0
  %1552 = vmatpush1.msra.mxu0 0.0
  %1553 = vmatprep.subr.mxu0 0.0
  %1554 = vmatpush1.msra.mxu0 0.0
  %1555 = vmatprep.subr.mxu0 0.0
  %1556 = vmatpush1.msra.mxu0 0.0
  %1557 = vmatprep.subr.mxu0 0.0
  %1558 = vmatpush1.msra.mxu0 0.0
  %1559 = vmatprep.subr.mxu0 0.0
  %1560 = vmatpush1.msra.mxu0 0.0
  %1561 = vmatprep.subr.mxu0 0.0
  %1562 = vmatpush1.msra.mxu0 0.0
  %1563 = vmatprep.subr.mxu0 0.0
  %1564 = vmatpush1.msra.mxu0 0.0
  %1565 = vmatprep.subr.mxu0 0.0
  %v1566 = vand.u32 %v51, 4294901760
  %v1567 = vsub.f32 %v51, %v1566
  %1568 = vmatpush1.msra.mxu0 %v1567
  %1569 = vmatprep.subr.mxu0 0.0
  %v1570 = vand.u32 %v46, 4294901760
  %v1571 = vsub.f32 %v46, %v1570
  %1572 = vmatpush1.msra.mxu0 %v1571
  %1573 = vmatprep.subr.mxu0 0.0
  %v1574 = vand.u32 %v41, 4294901760
  %v1575 = vsub.f32 %v41, %v1574
  %1576 = vmatpush1.msra.mxu0 %v1575
  %1577 = vmatprep.subr.mxu0 0.0
  %v1578 = vand.u32 %v36, 4294901760
  %v1579 = vsub.f32 %v36, %v1578
  %1580 = vmatpush1.msra.mxu0 %v1579
  %1581 = vmatprep.subr.mxu0 0.0
  %v1582 = vand.u32 %v31, 4294901760
  %v1583 = vsub.f32 %v31, %v1582
  %1584 = vmatpush1.msra.mxu0 %v1583
  %1585 = vmatprep.subr.mxu0 0.0
  %v1586 = vand.u32 %v26, 4294901760
  %v1587 = vsub.f32 %v26, %v1586
  %1588 = vmatpush1.msra.mxu0 %v1587
  %1589 = vmatprep.subr.mxu0 0.0
  %1590 = vmatpush2.msra.mxu0 0.0
  %1591 = vmatprep.subr.mxu0 0.0
  %1592 = vmatpush2.msra.mxu0 0.0
  %1593 = vmatprep.subr.mxu0 0.0
  %1594 = vmatpush2.msra.mxu0 0.0
  %1595 = vmatprep.subr.mxu0 0.0
  %1596 = vmatpush2.msra.mxu0 0.0
  %1597 = vmatprep.subr.mxu0 0.0
  %1598 = vmatpush2.msra.mxu0 0.0
  %1599 = vmatprep.subr.mxu0 0.0
  %1600 = vmatpush2.msra.mxu0 0.0
  %1601 = vmatprep.subr.mxu0 0.0
  %1602 = vmatpush2.msra.mxu0 0.0
  %1603 = vmatprep.subr.mxu0 0.0
  %1604 = vmatpush2.msra.mxu0 0.0
  %1605 = vmatprep.subr.mxu0 0.0
  %1606 = vmatpush2.msra.mxu0 0.0
  %1607 = vmatprep.subr.mxu0 0.0
  %1608 = vmatpush2.msra.mxu0 0.0
  %1609 = vmatprep.subr.mxu0 0.0
  %1610 = vmatpush2.msra.mxu0 0.0
  %1611 = vmatprep.subr.mxu0 0.0
  %1612 = vmatpush2.msra.mxu0 0.0
  %1613 = vmatprep.subr.mxu0 0.0
  %1614 = vmatpush2.msra.mxu0 0.0
  %1615 = vmatprep.subr.mxu0 0.0
  %1616 = vmatpush2.msra.mxu0 0.0
  %1617 = vmatprep.subr.mxu0 0.0
  %1618 = vmatpush2.msra.mxu0 0.0
  %1619 = vmatprep.subr.mxu0 0.0
  %1620 = vmatpush2.msra.mxu0 0.0
  %1621 = vmatprep.mubr.f32.mxu0 0.0
  %v1622 = vand.u32 %v54, 4294901760
  %v1623 = vsub.f32 %v54, %v1622
  %1624 = vmatmul.mubr.f32.gmra.mxu0 %v1623
  %v1625 = vpop.f32.mrf.mxu0
  %v1626 = vadd.f32 %v1536, %v1625
  %v1627 = vpop.f32.mrf.mxu0
  %1628 = vmatprep.mubr.f32.mxu0 0.0
  %v1629 = vand.u32 %v57, 4294901760
  %v1630 = vsub.f32 %v57, %v1629
  %1631 = vmatmul.mubr.f32.gmra.mxu0 %v1630
  %v1632 = vpop.f32.mrf.mxu0
  %v1633 = vadd.f32 %v1542, %v1632
  %v1634 = vpop.f32.mrf.mxu0
  %1635 = vdwg.mxu0
  %1636 = vmatprep.subr.mxu0 0.0
  %1637 = vmatpush1.msra.mxu0 0.0
  %1638 = vmatprep.subr.mxu0 0.0
  %1639 = vmatpush1.msra.mxu0 0.0
  %1640 = vmatprep.subr.mxu0 0.0
  %1641 = vmatpush1.msra.mxu0 0.0
  %1642 = vmatprep.subr.mxu0 0.0
  %1643 = vmatpush1.msra.mxu0 0.0
  %1644 = vmatprep.subr.mxu0 0.0
  %1645 = vmatpush1.msra.mxu0 0.0
  %1646 = vmatprep.subr.mxu0 0.0
  %1647 = vmatpush1.msra.mxu0 0.0
  %1648 = vmatprep.subr.mxu0 0.0
  %1649 = vmatpush1.msra.mxu0 0.0
  %1650 = vmatprep.subr.mxu0 0.0
  %1651 = vmatpush1.msra.mxu0 0.0
  %1652 = vmatprep.subr.mxu0 0.0
  %1653 = vmatpush1.msra.mxu0 0.0
  %1654 = vmatprep.subr.mxu0 0.0
  %1655 = vmatpush1.msra.mxu0 0.0
  %1656 = vmatprep.subr.mxu0 0.0
  %v1657 = vand.u32 %v51, 4294901760
  %1658 = vmatpush1.msra.mxu0 %v1657
  %1659 = vmatprep.subr.mxu0 0.0
  %v1660 = vand.u32 %v46, 4294901760
  %1661 = vmatpush1.msra.mxu0 %v1660
  %1662 = vmatprep.subr.mxu0 0.0
  %v1663 = vand.u32 %v41, 4294901760
  %1664 = vmatpush1.msra.mxu0 %v1663
  %1665 = vmatprep.subr.mxu0 0.0
  %v1666 = vand.u32 %v36, 4294901760
  %1667 = vmatpush1.msra.mxu0 %v1666
  %1668 = vmatprep.subr.mxu0 0.0
  %v1669 = vand.u32 %v31, 4294901760
  %1670 = vmatpush1.msra.mxu0 %v1669
  %1671 = vmatprep.subr.mxu0 0.0
  %v1672 = vand.u32 %v26, 4294901760
  %1673 = vmatpush1.msra.mxu0 %v1672
  %1674 = vmatprep.subr.mxu0 0.0
  %1675 = vmatpush2.msra.mxu0 0.0
  %1676 = vmatprep.subr.mxu0 0.0
  %1677 = vmatpush2.msra.mxu0 0.0
  %1678 = vmatprep.subr.mxu0 0.0
  %1679 = vmatpush2.msra.mxu0 0.0
  %1680 = vmatprep.subr.mxu0 0.0
  %1681 = vmatpush2.msra.mxu0 0.0
  %1682 = vmatprep.subr.mxu0 0.0
  %1683 = vmatpush2.msra.mxu0 0.0
  %1684 = vmatprep.subr.mxu0 0.0
  %1685 = vmatpush2.msra.mxu0 0.0
  %1686 = vmatprep.subr.mxu0 0.0
  %1687 = vmatpush2.msra.mxu0 0.0
  %1688 = vmatprep.subr.mxu0 0.0
  %1689 = vmatpush2.msra.mxu0 0.0
  %1690 = vmatprep.subr.mxu0 0.0
  %1691 = vmatpush2.msra.mxu0 0.0
  %1692 = vmatprep.subr.mxu0 0.0
  %1693 = vmatpush2.msra.mxu0 0.0
  %1694 = vmatprep.subr.mxu0 0.0
  %1695 = vmatpush2.msra.mxu0 0.0
  %1696 = vmatprep.subr.mxu0 0.0
  %1697 = vmatpush2.msra.mxu0 0.0
  %1698 = vmatprep.subr.mxu0 0.0
  %1699 = vmatpush2.msra.mxu0 0.0
  %1700 = vmatprep.subr.mxu0 0.0
  %1701 = vmatpush2.msra.mxu0 0.0
  %1702 = vmatprep.subr.mxu0 0.0
  %1703 = vmatpush2.msra.mxu0 0.0
  %1704 = vmatprep.subr.mxu0 0.0
  %1705 = vmatpush2.msra.mxu0 0.0
  %1706 = vmatprep.mubr.f32.mxu0 0.0
  %v1707 = vand.u32 %v54, 4294901760
  %v1708 = vsub.f32 %v54, %v1707
  %v1709 = vand.u32 %v1708, 4294901760
  %1710 = vmatmul.mubr.f32.gmra.mxu0 %v1709
  %v1711 = vpop.f32.mrf.mxu0
  %v1712 = vadd.f32 %v1626, %v1711
  %v1713 = vpop.f32.mrf.mxu0
  %1714 = vmatprep.mubr.f32.mxu0 0.0
  %v1715 = vand.u32 %v57, 4294901760
  %v1716 = vsub.f32 %v57, %v1715
  %v1717 = vand.u32 %v1716, 4294901760
  %1718 = vmatmul.mubr.f32.gmra.mxu0 %v1717
  %v1719 = vpop.f32.mrf.mxu0
  %v1720 = vadd.f32 %v1633, %v1719
  %v1721 = vpop.f32.mrf.mxu0
  %1722 = vdwg.mxu0
  %1723 = vmatprep.subr.mxu0 0.0
  %1724 = vmatpush1.msra.mxu0 0.0
  %1725 = vmatprep.subr.mxu0 0.0
  %1726 = vmatpush1.msra.mxu0 0.0
  %1727 = vmatprep.subr.mxu0 0.0
  %1728 = vmatpush1.msra.mxu0 0.0
  %1729 = vmatprep.subr.mxu0 0.0
  %1730 = vmatpush1.msra.mxu0 0.0
  %1731 = vmatprep.subr.mxu0 0.0
  %1732 = vmatpush1.msra.mxu0 0.0
  %1733 = vmatprep.subr.mxu0 0.0
  %1734 = vmatpush1.msra.mxu0 0.0
  %1735 = vmatprep.subr.mxu0 0.0
  %1736 = vmatpush1.msra.mxu0 0.0
  %1737 = vmatprep.subr.mxu0 0.0
  %1738 = vmatpush1.msra.mxu0 0.0
  %1739 = vmatprep.subr.mxu0 0.0
  %1740 = vmatpush1.msra.mxu0 0.0
  %1741 = vmatprep.subr.mxu0 0.0
  %1742 = vmatpush1.msra.mxu0 0.0
  %1743 = vmatprep.subr.mxu0 0.0
  %v1744 = vand.u32 %v51, 4294901760
  %v1745 = vsub.f32 %v51, %v1744
  %v1746 = vand.u32 %v1745, 4294901760
  %1747 = vmatpush1.msra.mxu0 %v1746
  %1748 = vmatprep.subr.mxu0 0.0
  %v1749 = vand.u32 %v46, 4294901760
  %v1750 = vsub.f32 %v46, %v1749
  %v1751 = vand.u32 %v1750, 4294901760
  %1752 = vmatpush1.msra.mxu0 %v1751
  %1753 = vmatprep.subr.mxu0 0.0
  %v1754 = vand.u32 %v41, 4294901760
  %v1755 = vsub.f32 %v41, %v1754
  %v1756 = vand.u32 %v1755, 4294901760
  %1757 = vmatpush1.msra.mxu0 %v1756
  %1758 = vmatprep.subr.mxu0 0.0
  %v1759 = vand.u32 %v36, 4294901760
  %v1760 = vsub.f32 %v36, %v1759
  %v1761 = vand.u32 %v1760, 4294901760
  %1762 = vmatpush1.msra.mxu0 %v1761
  %1763 = vmatprep.subr.mxu0 0.0
  %v1764 = vand.u32 %v31, 4294901760
  %v1765 = vsub.f32 %v31, %v1764
  %v1766 = vand.u32 %v1765, 4294901760
  %1767 = vmatpush1.msra.mxu0 %v1766
  %1768 = vmatprep.subr.mxu0 0.0
  %v1769 = vand.u32 %v26, 4294901760
  %v1770 = vsub.f32 %v26, %v1769
  %v1771 = vand.u32 %v1770, 4294901760
  %1772 = vmatpush1.msra.mxu0 %v1771
  %1773 = vmatprep.subr.mxu0 0.0
  %1774 = vmatpush2.msra.mxu0 0.0
  %1775 = vmatprep.subr.mxu0 0.0
  %1776 = vmatpush2.msra.mxu0 0.0
  %1777 = vmatprep.subr.mxu0 0.0
  %1778 = vmatpush2.msra.mxu0 0.0
  %1779 = vmatprep.subr.mxu0 0.0
  %1780 = vmatpush2.msra.mxu0 0.0
  %1781 = vmatprep.subr.mxu0 0.0
  %1782 = vmatpush2.msra.mxu0 0.0
  %1783 = vmatprep.subr.mxu0 0.0
  %1784 = vmatpush2.msra.mxu0 0.0
  %1785 = vmatprep.subr.mxu0 0.0
  %1786 = vmatpush2.msra.mxu0 0.0
  %1787 = vmatprep.subr.mxu0 0.0
  %1788 = vmatpush2.msra.mxu0 0.0
  %1789 = vmatprep.subr.mxu0 0.0
  %1790 = vmatpush2.msra.mxu0 0.0
  %1791 = vmatprep.subr.mxu0 0.0
  %1792 = vmatpush2.msra.mxu0 0.0
  %1793 = vmatprep.subr.mxu0 0.0
  %1794 = vmatpush2.msra.mxu0 0.0
  %1795 = vmatprep.subr.mxu0 0.0
  %1796 = vmatpush2.msra.mxu0 0.0
  %1797 = vmatprep.subr.mxu0 0.0
  %1798 = vmatpush2.msra.mxu0 0.0
  %1799 = vmatprep.subr.mxu0 0.0
  %1800 = vmatpush2.msra.mxu0 0.0
  %1801 = vmatprep.subr.mxu0 0.0
  %1802 = vmatpush2.msra.mxu0 0.0
  %1803 = vmatprep.subr.mxu0 0.0
  %1804 = vmatpush2.msra.mxu0 0.0
  %1805 = vmatprep.mubr.f32.mxu0 0.0
  %v1806 = vand.u32 %v54, 4294901760
  %1807 = vmatmul.mubr.f32.gmra.mxu0 %v1806
  %v1808 = vpop.f32.mrf.mxu0
  %v1809 = vadd.f32 %v1712, %v1808
  %v1810 = vpop.f32.mrf.mxu0
  %1811 = vmatprep.mubr.f32.mxu0 0.0
  %v1812 = vand.u32 %v57, 4294901760
  %1813 = vmatmul.mubr.f32.gmra.mxu0 %v1812
  %v1814 = vpop.f32.mrf.mxu0
  %v1815 = vadd.f32 %v1720, %v1814
  %v1816 = vpop.f32.mrf.mxu0
  %1817 = vdwg.mxu0
  %1818 = vmatprep.subr.mxu0 0.0
  %1819 = vmatpush1.msra.mxu0 0.0
  %1820 = vmatprep.subr.mxu0 0.0
  %1821 = vmatpush1.msra.mxu0 0.0
  %1822 = vmatprep.subr.mxu0 0.0
  %1823 = vmatpush1.msra.mxu0 0.0
  %1824 = vmatprep.subr.mxu0 0.0
  %1825 = vmatpush1.msra.mxu0 0.0
  %1826 = vmatprep.subr.mxu0 0.0
  %1827 = vmatpush1.msra.mxu0 0.0
  %1828 = vmatprep.subr.mxu0 0.0
  %1829 = vmatpush1.msra.mxu0 0.0
  %1830 = vmatprep.subr.mxu0 0.0
  %1831 = vmatpush1.msra.mxu0 0.0
  %1832 = vmatprep.subr.mxu0 0.0
  %1833 = vmatpush1.msra.mxu0 0.0
  %1834 = vmatprep.subr.mxu0 0.0
  %1835 = vmatpush1.msra.mxu0 0.0
  %1836 = vmatprep.subr.mxu0 0.0
  %1837 = vmatpush1.msra.mxu0 0.0
  %1838 = vmatprep.subr.mxu0 0.0
  %v1839 = vand.u32 %v51, 4294901760
  %1840 = vmatpush1.msra.mxu0 %v1839
  %1841 = vmatprep.subr.mxu0 0.0
  %v1842 = vand.u32 %v46, 4294901760
  %1843 = vmatpush1.msra.mxu0 %v1842
  %1844 = vmatprep.subr.mxu0 0.0
  %v1845 = vand.u32 %v41, 4294901760
  %1846 = vmatpush1.msra.mxu0 %v1845
  %1847 = vmatprep.subr.mxu0 0.0
  %v1848 = vand.u32 %v36, 4294901760
  %1849 = vmatpush1.msra.mxu0 %v1848
  %1850 = vmatprep.subr.mxu0 0.0
  %v1851 = vand.u32 %v31, 4294901760
  %1852 = vmatpush1.msra.mxu0 %v1851
  %1853 = vmatprep.subr.mxu0 0.0
  %v1854 = vand.u32 %v26, 4294901760
  %1855 = vmatpush1.msra.mxu0 %v1854
  %1856 = vmatprep.subr.mxu0 0.0
  %1857 = vmatpush2.msra.mxu0 0.0
  %1858 = vmatprep.subr.mxu0 0.0
  %1859 = vmatpush2.msra.mxu0 0.0
  %1860 = vmatprep.subr.mxu0 0.0
  %1861 = vmatpush2.msra.mxu0 0.0
  %1862 = vmatprep.subr.mxu0 0.0
  %1863 = vmatpush2.msra.mxu0 0.0
  %1864 = vmatprep.subr.mxu0 0.0
  %1865 = vmatpush2.msra.mxu0 0.0
  %1866 = vmatprep.subr.mxu0 0.0
  %1867 = vmatpush2.msra.mxu0 0.0
  %1868 = vmatprep.subr.mxu0 0.0
  %1869 = vmatpush2.msra.mxu0 0.0
  %1870 = vmatprep.subr.mxu0 0.0
  %1871 = vmatpush2.msra.mxu0 0.0
  %1872 = vmatprep.subr.mxu0 0.0
  %1873 = vmatpush2.msra.mxu0 0.0
  %1874 = vmatprep.subr.mxu0 0.0
  %1875 = vmatpush2.msra.mxu0 0.0
  %1876 = vmatprep.subr.mxu0 0.0
  %1877 = vmatpush2.msra.mxu0 0.0
  %1878 = vmatprep.subr.mxu0 0.0
  %1879 = vmatpush2.msra.mxu0 0.0
  %1880 = vmatprep.subr.mxu0 0.0
  %1881 = vmatpush2.msra.mxu0 0.0
  %1882 = vmatprep.subr.mxu0 0.0
  %1883 = vmatpush2.msra.mxu0 0.0
  %1884 = vmatprep.subr.mxu0 0.0
  %1885 = vmatpush2.msra.mxu0 0.0
  %1886 = vmatprep.subr.mxu0 0.0
  %1887 = vmatpush2.msra.mxu0 0.0
  %1888 = vmatprep.mubr.f32.mxu0 0.0
  %v1889 = vand.u32 %v54, 4294901760
  %1890 = vmatmul.mubr.f32.gmra.mxu0 %v1889
  %v1891 = vpop.f32.mrf.mxu0
  %v1892 = vadd.f32 %v1809, %v1891
  %v1893 = vpop.f32.mrf.mxu0
  %1894 = vmatprep.mubr.f32.mxu0 0.0
  %v1895 = vand.u32 %v57, 4294901760
  %1896 = vmatmul.mubr.f32.gmra.mxu0 %v1895
  %v1897 = vpop.f32.mrf.mxu0
  %v1898 = vadd.f32 %v1815, %v1897
  %v1899 = vpop.f32.mrf.mxu0
  %1900 = vdwg.mxu0
  %v1901 = vld [vmem:[%s2] sm:$0x1f]
  %v1903 = vlaneseq
  %v1904 = vshrl.u32 %v1903, 7
  %v1905 = vsub.s32 0, %v1904
  %v1906 = vrot.slane %v1901, %v1905
  %v1907 = vlaneseq
  %v1908 = vshrl.u32 %v1907, 7
  %v1909 = vsub.s32 1, %v1908
  %v1910 = vrot.slane %v1901, %v1909
  %v1911 = vlaneseq
  %v1912 = vshrl.u32 %v1911, 7
  %v1913 = vsub.s32 2, %v1912
  %v1914 = vrot.slane %v1901, %v1913
  %v1915 = vlaneseq
  %v1916 = vshrl.u32 %v1915, 7
  %v1917 = vsub.s32 3, %v1916
  %v1918 = vrot.slane %v1901, %v1917
  %v1919 = vlaneseq
  %v1920 = vshrl.u32 %v1919, 7
  %v1921 = vsub.s32 4, %v1920
  %v1922 = vrot.slane %v1901, %v1921
  %v1928 = vmul.f32 %v1906, %v692
  %v1929 = vmul.f32 %v1910, %v694
  %v1930 = vmul.f32 %v1914, %v1336
  %v1931 = vmul.f32 %v1918, %v1338
  %v1932 = vmul.f32 %v1922, %v1892
  %v1933 = vmul.f32 %v1906, %v699
  %v1934 = vmul.f32 %v1910, %v701
  %v1935 = vmul.f32 %v1914, %v1343
  %v1936 = vmul.f32 %v1918, %v1345
  %v1937 = vmul.f32 %v1922, %v1898
  %v1938 = vld [vmem:[%s4] sm:$0x1f]
  %v1939 = vld [vmem:[%s3] sm:$0x1f]
  %v1941 = vlaneseq
  %v1942 = vshrl.u32 %v1941, 7
  %v1943 = vsub.s32 0, %v1942
  %v1944 = vrot.slane %v1939, %v1943
  %v1945 = vlaneseq
  %v1946 = vshrl.u32 %v1945, 7
  %v1947 = vsub.s32 1, %v1946
  %v1948 = vrot.slane %v1939, %v1947
  %v1949 = vlaneseq
  %v1950 = vshrl.u32 %v1949, 7
  %v1951 = vsub.s32 2, %v1950
  %v1952 = vrot.slane %v1939, %v1951
  %v1953 = vlaneseq
  %v1954 = vshrl.u32 %v1953, 7
  %v1955 = vsub.s32 3, %v1954
  %v1956 = vrot.slane %v1939, %v1955
  %v1957 = vlaneseq
  %v1958 = vshrl.u32 %v1957, 7
  %v1959 = vsub.s32 4, %v1958
  %v1960 = vrot.slane %v1939, %v1959
  %v1966 = vmul.f32 %v692, %v1944
  %v1967 = vmul.f32 %v694, %v1948
  %v1968 = vmul.f32 %v1336, %v1952
  %v1969 = vmul.f32 %v1338, %v1956
  %v1970 = vmul.f32 %v1892, %v1960
  %v1971 = vmul.f32 %v699, %v1944
  %v1972 = vmul.f32 %v701, %v1948
  %v1973 = vmul.f32 %v1343, %v1952
  %v1974 = vmul.f32 %v1345, %v1956
  %v1975 = vmul.f32 %v1898, %v1960
  %v1977 = vlaneseq
  %v1978 = vshrl.u32 %v1977, 7
  %v1979 = vsub.s32 0, %v1978
  %v1980 = vrot.slane %v1938, %v1979
  %v1981 = vlaneseq
  %v1982 = vshrl.u32 %v1981, 7
  %v1983 = vsub.s32 1, %v1982
  %v1984 = vrot.slane %v1938, %v1983
  %v1985 = vlaneseq
  %v1986 = vshrl.u32 %v1985, 7
  %v1987 = vsub.s32 2, %v1986
  %v1988 = vrot.slane %v1938, %v1987
  %v1989 = vlaneseq
  %v1990 = vshrl.u32 %v1989, 7
  %v1991 = vsub.s32 3, %v1990
  %v1992 = vrot.slane %v1938, %v1991
  %v1993 = vlaneseq
  %v1994 = vshrl.u32 %v1993, 7
  %v1995 = vsub.s32 4, %v1994
  %v1996 = vrot.slane %v1938, %v1995
  %v2002 = vadd.f32 %v1980, %v1966
  %v2003 = vadd.f32 %v1984, %v1967
  %v2004 = vadd.f32 %v1988, %v1968
  %v2005 = vadd.f32 %v1992, %v1969
  %v2006 = vadd.f32 %v1996, %v1970
  %v2007 = vadd.f32 %v1980, %v1971
  %v2008 = vadd.f32 %v1984, %v1972
  %v2009 = vadd.f32 %v1988, %v1973
  %v2010 = vadd.f32 %v1992, %v1974
  %v2011 = vadd.f32 %v1996, %v1975
  %v2012 = vand.u32 2147483647, %v2002
  %vm2013 = vcmp.le.f32.partialorder %v2012, 0.7853982
  %vm2014 = vcmp.lt.s32.totalorder %v2002, 0
  %v2015 = vand.u32 %v2002, 2139095040
  %v2016 = vshrl.u32 %v2015, 23
  %v2017 = vsub.s32 %v2016, 127
  %v2018 = vand.u32 2147483647, %v2002
  %v2019 = vand.u32 %v2018, 8388607
  %v2020 = vor.u32 %v2019, 8388608
  %v2021 = vsub.s32 0, %v2020
  %v2022 = vadd.s32 %v2017, 1
  %vm2023 = vcmp.gt.s32.totalorder %v2022, 0
  %v2024 = vsel %vm2023, %v2022, 0
  %v2025 = vshrl.u32 %v2024, 5
  %v2026 = vand.u32 %v2024, 31
  %v2027 = vsub.s32 32, %v2026
  %v2028 = vshrl.u32 683565275, %v2027
  %v2029 = vshll.u32 683565275, %v2026
  %v2030 = vshrl.u32 2475754826, %v2027
  %v2031 = vor.u32 %v2029, %v2030
  %v2032 = vshll.u32 2475754826, %v2026
  %v2033 = vshrl.u32 2131351028, %v2027
  %v2034 = vor.u32 %v2032, %v2033
  %v2035 = vshll.u32 2131351028, %v2026
  %v2036 = vshrl.u32 2102212464, %v2027
  %v2037 = vor.u32 %v2035, %v2036
  %v2038 = vshll.u32 2102212464, %v2026
  %v2039 = vshrl.u32 920167782, %v2027
  %v2040 = vor.u32 %v2038, %v2039
  %v2041 = vshll.u32 920167782, %v2026
  %v2042 = vshrl.u32 1326507024, %v2027
  %v2043 = vor.u32 %v2041, %v2042
  %vm2044 = vcmp.lt.s32.totalorder %v2025, 1
  %vm2045 = vcmp.lt.s32.totalorder %v2025, 2
  %vm2046 = vcmp.lt.s32.totalorder %v2025, 3
  %vm2047 = vcmp.lt.s32.totalorder %v2025, 4
  %v2048 = vsel %vm2044, %v2028, %v2031
  %v2049 = vsel %vm2047, %v2037, 2102212464
  %v2050 = vsel %vm2046, %v2034, %v2049
  %v2051 = vsel %vm2045, %v2048, %v2050
  %v2052 = vsel %vm2044, %v2031, %v2034
  %v2053 = vsel %vm2047, %v2040, 920167782
  %v2054 = vsel %vm2046, %v2037, %v2053
  %v2055 = vsel %vm2045, %v2052, %v2054
  %v2056 = vsel %vm2044, %v2034, %v2037
  %v2057 = vsel %vm2047, %v2043, 1326507024
  %v2058 = vsel %vm2046, %v2040, %v2057
  %v2059 = vsel %vm2045, %v2056, %v2058
  %v2060 = vshll.u32 %v2020, 8
  %v2061 = vmul.u32.u64.compose %v2060, %v2059
  %v2062 = vextract.low.u32 %v2061
  %v2063 = vextract.high.u32 %v2061
  %v2064 = vmul.u32.u64.compose %v2060, %v2055
  %v2065 = vextract.low.u32 %v2064
  %v2066 = vextract.high.u32 %v2064
  %v2067 = vmul.u32 %v2060, %v2051
  %v2068 = vadd.s32 %v2063, %v2065
  %vm2069 = vc.u32 %v2063, %v2065
  %v2070 = vadd.s32 %v2066, 1
  %v2071 = vsel %vm2069, %v2070, %v2066
  %v2072 = vadd.s32 %v2067, %v2071
  %v2073 = vadd.s32 %v2072, 536870912
  %v2074 = vshrl.u32 %v2073, 30
  %v2075 = vshll.u32 %v2074, 30
  %v2076 = vsub.s32 %v2072, %v2075
  %vm2077 = vcmp.lt.s32.totalorder %v2076, 0
  %v2078 = vsub.s32 0, %v2076
  %v2079 = vsel %vm2077, %v2078, %v2076
  %v2080 = vclz %v2079
  %v2081 = vsub.s32 %v2080, 2
  %vm2082 = vcmp.gt.s32.totalorder 0, %v2081
  %v2083 = vsel %vm2082, 0, %v2081
  %v2084 = vsub.s32 32, %v2083
  %v2085 = vshll.u32 %v2076, %v2083
  %v2086 = vshrl.u32 %v2068, %v2084
  %v2087 = vor.u32 %v2085, %v2086
  %v2088 = vsub.s32 4294967266, %v2083
  %v2089 = vadd.s32 %v2088, 127
  %v2090 = vshll.u32 %v2089, 23
  %v2091 = vor.u32 4788187, %v2090
  %v2092 = vand.u32 2147483647, %v2091
  %v2094 = vcvt.s32.f32 %v2087
  %v2095 = vmul.f32 %v2094, %v2092
  %v2096 = vxor.u32 %v2095, 2147483648
  %v2097 = vsel %vm2014, %v2096, %v2095
  %v2098 = vsub.s32 4, %v2074
  %v2099 = vsel %vm2014, %v2098, %v2074
  %v2100 = vsel %vm2013, %v2002, %v2097
  %v2101 = vsel %vm2013, 0, %v2099
  %v2102 = vcosq.f32.pop %v2100
  %v2103 = vsinq.f32.pop %v2100
  %vm2104 = vweird.f32 %v2002
  %v2105 = vadd.s32 %v2101, 3
  %v2106 = vand.u32 %v2105, 3
  %vm2107 = vcmp.lt.s32.totalorder %v2106, 2
  %vm2108 = vcmp.eq.s32.totalorder %v2106, 0
  %v2109 = vxor.u32 %v2103, 2147483648
  %v2110 = vsel %vm2108, %v2102, %v2109
  %vm2111 = vcmp.eq.s32.totalorder %v2106, 2
  %v2112 = vxor.u32 %v2102, 2147483648
  %v2113 = vsel %vm2111, %v2112, %v2103
  %v2114 = vsel %vm2107, %v2110, %v2113
  %v2115 = vsel %vm2104, nan, %v2114
  %v2116 = vand.u32 2147483647, %v2003
  %vm2117 = vcmp.le.f32.partialorder %v2116, 0.7853982
  %vm2118 = vcmp.lt.s32.totalorder %v2003, 0
  %v2119 = vand.u32 %v2003, 2139095040
  %v2120 = vshrl.u32 %v2119, 23
  %v2121 = vsub.s32 %v2120, 127
  %v2122 = vand.u32 2147483647, %v2003
  %v2123 = vand.u32 %v2122, 8388607
  %v2124 = vor.u32 %v2123, 8388608
  %v2125 = vsub.s32 0, %v2124
  %v2126 = vadd.s32 %v2121, 1
  %vm2127 = vcmp.gt.s32.totalorder %v2126, 0
  %v2128 = vsel %vm2127, %v2126, 0
  %v2129 = vshrl.u32 %v2128, 5
  %v2130 = vand.u32 %v2128, 31
  %v2131 = vsub.s32 32, %v2130
  %v2132 = vshrl.u32 683565275, %v2131
  %v2133 = vshll.u32 683565275, %v2130
  %v2134 = vshrl.u32 2475754826, %v2131
  %v2135 = vor.u32 %v2133, %v2134
  %v2136 = vshll.u32 2475754826, %v2130
  %v2137 = vshrl.u32 2131351028, %v2131
  %v2138 = vor.u32 %v2136, %v2137
  %v2139 = vshll.u32 2131351028, %v2130
  %v2140 = vshrl.u32 2102212464, %v2131
  %v2141 = vor.u32 %v2139, %v2140
  %v2142 = vshll.u32 2102212464, %v2130
  %v2143 = vshrl.u32 920167782, %v2131
  %v2144 = vor.u32 %v2142, %v2143
  %v2145 = vshll.u32 920167782, %v2130
  %v2146 = vshrl.u32 1326507024, %v2131
  %v2147 = vor.u32 %v2145, %v2146
  %vm2148 = vcmp.lt.s32.totalorder %v2129, 1
  %vm2149 = vcmp.lt.s32.totalorder %v2129, 2
  %vm2150 = vcmp.lt.s32.totalorder %v2129, 3
  %vm2151 = vcmp.lt.s32.totalorder %v2129, 4
  %v2152 = vsel %vm2148, %v2132, %v2135
  %v2153 = vsel %vm2151, %v2141, 2102212464
  %v2154 = vsel %vm2150, %v2138, %v2153
  %v2155 = vsel %vm2149, %v2152, %v2154
  %v2156 = vsel %vm2148, %v2135, %v2138
  %v2157 = vsel %vm2151, %v2144, 920167782
  %v2158 = vsel %vm2150, %v2141, %v2157
  %v2159 = vsel %vm2149, %v2156, %v2158
  %v2160 = vsel %vm2148, %v2138, %v2141
  %v2161 = vsel %vm2151, %v2147, 1326507024
  %v2162 = vsel %vm2150, %v2144, %v2161
  %v2163 = vsel %vm2149, %v2160, %v2162
  %v2164 = vshll.u32 %v2124, 8
  %v2165 = vmul.u32.u64.compose %v2164, %v2163
  %v2166 = vextract.low.u32 %v2165
  %v2167 = vextract.high.u32 %v2165
  %v2168 = vmul.u32.u64.compose %v2164, %v2159
  %v2169 = vextract.low.u32 %v2168
  %v2170 = vextract.high.u32 %v2168
  %v2171 = vmul.u32 %v2164, %v2155
  %v2172 = vadd.s32 %v2167, %v2169
  %vm2173 = vc.u32 %v2167, %v2169
  %v2174 = vadd.s32 %v2170, 1
  %v2175 = vsel %vm2173, %v2174, %v2170
  %v2176 = vadd.s32 %v2171, %v2175
  %v2177 = vadd.s32 %v2176, 536870912
  %v2178 = vshrl.u32 %v2177, 30
  %v2179 = vshll.u32 %v2178, 30
  %v2180 = vsub.s32 %v2176, %v2179
  %vm2181 = vcmp.lt.s32.totalorder %v2180, 0
  %v2182 = vsub.s32 0, %v2180
  %v2183 = vsel %vm2181, %v2182, %v2180
  %v2184 = vclz %v2183
  %v2185 = vsub.s32 %v2184, 2
  %vm2186 = vcmp.gt.s32.totalorder 0, %v2185
  %v2187 = vsel %vm2186, 0, %v2185
  %v2188 = vsub.s32 32, %v2187
  %v2189 = vshll.u32 %v2180, %v2187
  %v2190 = vshrl.u32 %v2172, %v2188
  %v2191 = vor.u32 %v2189, %v2190
  %v2192 = vsub.s32 4294967266, %v2187
  %v2193 = vadd.s32 %v2192, 127
  %v2194 = vshll.u32 %v2193, 23
  %v2195 = vor.u32 4788187, %v2194
  %v2196 = vand.u32 2147483647, %v2195
  %v2198 = vcvt.s32.f32 %v2191
  %v2199 = vmul.f32 %v2198, %v2196
  %v2200 = vxor.u32 %v2199, 2147483648
  %v2201 = vsel %vm2118, %v2200, %v2199
  %v2202 = vsub.s32 4, %v2178
  %v2203 = vsel %vm2118, %v2202, %v2178
  %v2204 = vsel %vm2117, %v2003, %v2201
  %v2205 = vsel %vm2117, 0, %v2203
  %v2206 = vcosq.f32.pop %v2204
  %v2207 = vsinq.f32.pop %v2204
  %vm2208 = vweird.f32 %v2003
  %v2209 = vadd.s32 %v2205, 3
  %v2210 = vand.u32 %v2209, 3
  %vm2211 = vcmp.lt.s32.totalorder %v2210, 2
  %vm2212 = vcmp.eq.s32.totalorder %v2210, 0
  %v2213 = vxor.u32 %v2207, 2147483648
  %v2214 = vsel %vm2212, %v2206, %v2213
  %vm2215 = vcmp.eq.s32.totalorder %v2210, 2
  %v2216 = vxor.u32 %v2206, 2147483648
  %v2217 = vsel %vm2215, %v2216, %v2207
  %v2218 = vsel %vm2211, %v2214, %v2217
  %v2219 = vsel %vm2208, nan, %v2218
  %v2220 = vand.u32 2147483647, %v2004
  %vm2221 = vcmp.le.f32.partialorder %v2220, 0.7853982
  %vm2222 = vcmp.lt.s32.totalorder %v2004, 0
  %v2223 = vand.u32 %v2004, 2139095040
  %v2224 = vshrl.u32 %v2223, 23
  %v2225 = vsub.s32 %v2224, 127
  %v2226 = vand.u32 2147483647, %v2004
  %v2227 = vand.u32 %v2226, 8388607
  %v2228 = vor.u32 %v2227, 8388608
  %v2229 = vsub.s32 0, %v2228
  %v2230 = vadd.s32 %v2225, 1
  %vm2231 = vcmp.gt.s32.totalorder %v2230, 0
  %v2232 = vsel %vm2231, %v2230, 0
  %v2233 = vshrl.u32 %v2232, 5
  %v2234 = vand.u32 %v2232, 31
  %v2235 = vsub.s32 32, %v2234
  %v2236 = vshrl.u32 683565275, %v2235
  %v2237 = vshll.u32 683565275, %v2234
  %v2238 = vshrl.u32 2475754826, %v2235
  %v2239 = vor.u32 %v2237, %v2238
  %v2240 = vshll.u32 2475754826, %v2234
  %v2241 = vshrl.u32 2131351028, %v2235
  %v2242 = vor.u32 %v2240, %v2241
  %v2243 = vshll.u32 2131351028, %v2234
  %v2244 = vshrl.u32 2102212464, %v2235
  %v2245 = vor.u32 %v2243, %v2244
  %v2246 = vshll.u32 2102212464, %v2234
  %v2247 = vshrl.u32 920167782, %v2235
  %v2248 = vor.u32 %v2246, %v2247
  %v2249 = vshll.u32 920167782, %v2234
  %v2250 = vshrl.u32 1326507024, %v2235
  %v2251 = vor.u32 %v2249, %v2250
  %vm2252 = vcmp.lt.s32.totalorder %v2233, 1
  %vm2253 = vcmp.lt.s32.totalorder %v2233, 2
  %vm2254 = vcmp.lt.s32.totalorder %v2233, 3
  %vm2255 = vcmp.lt.s32.totalorder %v2233, 4
  %v2256 = vsel %vm2252, %v2236, %v2239
  %v2257 = vsel %vm2255, %v2245, 2102212464
  %v2258 = vsel %vm2254, %v2242, %v2257
  %v2259 = vsel %vm2253, %v2256, %v2258
  %v2260 = vsel %vm2252, %v2239, %v2242
  %v2261 = vsel %vm2255, %v2248, 920167782
  %v2262 = vsel %vm2254, %v2245, %v2261
  %v2263 = vsel %vm2253, %v2260, %v2262
  %v2264 = vsel %vm2252, %v2242, %v2245
  %v2265 = vsel %vm2255, %v2251, 1326507024
  %v2266 = vsel %vm2254, %v2248, %v2265
  %v2267 = vsel %vm2253, %v2264, %v2266
  %v2268 = vshll.u32 %v2228, 8
  %v2269 = vmul.u32.u64.compose %v2268, %v2267
  %v2270 = vextract.low.u32 %v2269
  %v2271 = vextract.high.u32 %v2269
  %v2272 = vmul.u32.u64.compose %v2268, %v2263
  %v2273 = vextract.low.u32 %v2272
  %v2274 = vextract.high.u32 %v2272
  %v2275 = vmul.u32 %v2268, %v2259
  %v2276 = vadd.s32 %v2271, %v2273
  %vm2277 = vc.u32 %v2271, %v2273
  %v2278 = vadd.s32 %v2274, 1
  %v2279 = vsel %vm2277, %v2278, %v2274
  %v2280 = vadd.s32 %v2275, %v2279
  %v2281 = vadd.s32 %v2280, 536870912
  %v2282 = vshrl.u32 %v2281, 30
  %v2283 = vshll.u32 %v2282, 30
  %v2284 = vsub.s32 %v2280, %v2283
  %vm2285 = vcmp.lt.s32.totalorder %v2284, 0
  %v2286 = vsub.s32 0, %v2284
  %v2287 = vsel %vm2285, %v2286, %v2284
  %v2288 = vclz %v2287
  %v2289 = vsub.s32 %v2288, 2
  %vm2290 = vcmp.gt.s32.totalorder 0, %v2289
  %v2291 = vsel %vm2290, 0, %v2289
  %v2292 = vsub.s32 32, %v2291
  %v2293 = vshll.u32 %v2284, %v2291
  %v2294 = vshrl.u32 %v2276, %v2292
  %v2295 = vor.u32 %v2293, %v2294
  %v2296 = vsub.s32 4294967266, %v2291
  %v2297 = vadd.s32 %v2296, 127
  %v2298 = vshll.u32 %v2297, 23
  %v2299 = vor.u32 4788187, %v2298
  %v2300 = vand.u32 2147483647, %v2299
  %v2302 = vcvt.s32.f32 %v2295
  %v2303 = vmul.f32 %v2302, %v2300
  %v2304 = vxor.u32 %v2303, 2147483648
  %v2305 = vsel %vm2222, %v2304, %v2303
  %v2306 = vsub.s32 4, %v2282
  %v2307 = vsel %vm2222, %v2306, %v2282
  %v2308 = vsel %vm2221, %v2004, %v2305
  %v2309 = vsel %vm2221, 0, %v2307
  %v2310 = vcosq.f32.pop %v2308
  %v2311 = vsinq.f32.pop %v2308
  %vm2312 = vweird.f32 %v2004
  %v2313 = vadd.s32 %v2309, 3
  %v2314 = vand.u32 %v2313, 3
  %vm2315 = vcmp.lt.s32.totalorder %v2314, 2
  %vm2316 = vcmp.eq.s32.totalorder %v2314, 0
  %v2317 = vxor.u32 %v2311, 2147483648
  %v2318 = vsel %vm2316, %v2310, %v2317
  %vm2319 = vcmp.eq.s32.totalorder %v2314, 2
  %v2320 = vxor.u32 %v2310, 2147483648
  %v2321 = vsel %vm2319, %v2320, %v2311
  %v2322 = vsel %vm2315, %v2318, %v2321
  %v2323 = vsel %vm2312, nan, %v2322
  %v2324 = vand.u32 2147483647, %v2005
  %vm2325 = vcmp.le.f32.partialorder %v2324, 0.7853982
  %vm2326 = vcmp.lt.s32.totalorder %v2005, 0
  %v2327 = vand.u32 %v2005, 2139095040
  %v2328 = vshrl.u32 %v2327, 23
  %v2329 = vsub.s32 %v2328, 127
  %v2330 = vand.u32 2147483647, %v2005
  %v2331 = vand.u32 %v2330, 8388607
  %v2332 = vor.u32 %v2331, 8388608
  %v2333 = vsub.s32 0, %v2332
  %v2334 = vadd.s32 %v2329, 1
  %vm2335 = vcmp.gt.s32.totalorder %v2334, 0
  %v2336 = vsel %vm2335, %v2334, 0
  %v2337 = vshrl.u32 %v2336, 5
  %v2338 = vand.u32 %v2336, 31
  %v2339 = vsub.s32 32, %v2338
  %v2340 = vshrl.u32 683565275, %v2339
  %v2341 = vshll.u32 683565275, %v2338
  %v2342 = vshrl.u32 2475754826, %v2339
  %v2343 = vor.u32 %v2341, %v2342
  %v2344 = vshll.u32 2475754826, %v2338
  %v2345 = vshrl.u32 2131351028, %v2339
  %v2346 = vor.u32 %v2344, %v2345
  %v2347 = vshll.u32 2131351028, %v2338
  %v2348 = vshrl.u32 2102212464, %v2339
  %v2349 = vor.u32 %v2347, %v2348
  %v2350 = vshll.u32 2102212464, %v2338
  %v2351 = vshrl.u32 920167782, %v2339
  %v2352 = vor.u32 %v2350, %v2351
  %v2353 = vshll.u32 920167782, %v2338
  %v2354 = vshrl.u32 1326507024, %v2339
  %v2355 = vor.u32 %v2353, %v2354
  %vm2356 = vcmp.lt.s32.totalorder %v2337, 1
  %vm2357 = vcmp.lt.s32.totalorder %v2337, 2
  %vm2358 = vcmp.lt.s32.totalorder %v2337, 3
  %vm2359 = vcmp.lt.s32.totalorder %v2337, 4
  %v2360 = vsel %vm2356, %v2340, %v2343
  %v2361 = vsel %vm2359, %v2349, 2102212464
  %v2362 = vsel %vm2358, %v2346, %v2361
  %v2363 = vsel %vm2357, %v2360, %v2362
  %v2364 = vsel %vm2356, %v2343, %v2346
  %v2365 = vsel %vm2359, %v2352, 920167782
  %v2366 = vsel %vm2358, %v2349, %v2365
  %v2367 = vsel %vm2357, %v2364, %v2366
  %v2368 = vsel %vm2356, %v2346, %v2349
  %v2369 = vsel %vm2359, %v2355, 1326507024
  %v2370 = vsel %vm2358, %v2352, %v2369
  %v2371 = vsel %vm2357, %v2368, %v2370
  %v2372 = vshll.u32 %v2332, 8
  %v2373 = vmul.u32.u64.compose %v2372, %v2371
  %v2374 = vextract.low.u32 %v2373
  %v2375 = vextract.high.u32 %v2373
  %v2376 = vmul.u32.u64.compose %v2372, %v2367
  %v2377 = vextract.low.u32 %v2376
  %v2378 = vextract.high.u32 %v2376
  %v2379 = vmul.u32 %v2372, %v2363
  %v2380 = vadd.s32 %v2375, %v2377
  %vm2381 = vc.u32 %v2375, %v2377
  %v2382 = vadd.s32 %v2378, 1
  %v2383 = vsel %vm2381, %v2382, %v2378
  %v2384 = vadd.s32 %v2379, %v2383
  %v2385 = vadd.s32 %v2384, 536870912
  %v2386 = vshrl.u32 %v2385, 30
  %v2387 = vshll.u32 %v2386, 30
  %v2388 = vsub.s32 %v2384, %v2387
  %vm2389 = vcmp.lt.s32.totalorder %v2388, 0
  %v2390 = vsub.s32 0, %v2388
  %v2391 = vsel %vm2389, %v2390, %v2388
  %v2392 = vclz %v2391
  %v2393 = vsub.s32 %v2392, 2
  %vm2394 = vcmp.gt.s32.totalorder 0, %v2393
  %v2395 = vsel %vm2394, 0, %v2393
  %v2396 = vsub.s32 32, %v2395
  %v2397 = vshll.u32 %v2388, %v2395
  %v2398 = vshrl.u32 %v2380, %v2396
  %v2399 = vor.u32 %v2397, %v2398
  %v2400 = vsub.s32 4294967266, %v2395
  %v2401 = vadd.s32 %v2400, 127
  %v2402 = vshll.u32 %v2401, 23
  %v2403 = vor.u32 4788187, %v2402
  %v2404 = vand.u32 2147483647, %v2403
  %v2406 = vcvt.s32.f32 %v2399
  %v2407 = vmul.f32 %v2406, %v2404
  %v2408 = vxor.u32 %v2407, 2147483648
  %v2409 = vsel %vm2326, %v2408, %v2407
  %v2410 = vsub.s32 4, %v2386
  %v2411 = vsel %vm2326, %v2410, %v2386
  %v2412 = vsel %vm2325, %v2005, %v2409
  %v2413 = vsel %vm2325, 0, %v2411
  %v2414 = vcosq.f32.pop %v2412
  %v2415 = vsinq.f32.pop %v2412
  %vm2416 = vweird.f32 %v2005
  %v2417 = vadd.s32 %v2413, 3
  %v2418 = vand.u32 %v2417, 3
  %vm2419 = vcmp.lt.s32.totalorder %v2418, 2
  %vm2420 = vcmp.eq.s32.totalorder %v2418, 0
  %v2421 = vxor.u32 %v2415, 2147483648
  %v2422 = vsel %vm2420, %v2414, %v2421
  %vm2423 = vcmp.eq.s32.totalorder %v2418, 2
  %v2424 = vxor.u32 %v2414, 2147483648
  %v2425 = vsel %vm2423, %v2424, %v2415
  %v2426 = vsel %vm2419, %v2422, %v2425
  %v2427 = vsel %vm2416, nan, %v2426
  %v2428 = vand.u32 2147483647, %v2006
  %vm2429 = vcmp.le.f32.partialorder %v2428, 0.7853982
  %vm2430 = vcmp.lt.s32.totalorder %v2006, 0
  %v2431 = vand.u32 %v2006, 2139095040
  %v2432 = vshrl.u32 %v2431, 23
  %v2433 = vsub.s32 %v2432, 127
  %v2434 = vand.u32 2147483647, %v2006
  %v2435 = vand.u32 %v2434, 8388607
  %v2436 = vor.u32 %v2435, 8388608
  %v2437 = vsub.s32 0, %v2436
  %v2438 = vadd.s32 %v2433, 1
  %vm2439 = vcmp.gt.s32.totalorder %v2438, 0
  %v2440 = vsel %vm2439, %v2438, 0
  %v2441 = vshrl.u32 %v2440, 5
  %v2442 = vand.u32 %v2440, 31
  %v2443 = vsub.s32 32, %v2442
  %v2444 = vshrl.u32 683565275, %v2443
  %v2445 = vshll.u32 683565275, %v2442
  %v2446 = vshrl.u32 2475754826, %v2443
  %v2447 = vor.u32 %v2445, %v2446
  %v2448 = vshll.u32 2475754826, %v2442
  %v2449 = vshrl.u32 2131351028, %v2443
  %v2450 = vor.u32 %v2448, %v2449
  %v2451 = vshll.u32 2131351028, %v2442
  %v2452 = vshrl.u32 2102212464, %v2443
  %v2453 = vor.u32 %v2451, %v2452
  %v2454 = vshll.u32 2102212464, %v2442
  %v2455 = vshrl.u32 920167782, %v2443
  %v2456 = vor.u32 %v2454, %v2455
  %v2457 = vshll.u32 920167782, %v2442
  %v2458 = vshrl.u32 1326507024, %v2443
  %v2459 = vor.u32 %v2457, %v2458
  %vm2460 = vcmp.lt.s32.totalorder %v2441, 1
  %vm2461 = vcmp.lt.s32.totalorder %v2441, 2
  %vm2462 = vcmp.lt.s32.totalorder %v2441, 3
  %vm2463 = vcmp.lt.s32.totalorder %v2441, 4
  %v2464 = vsel %vm2460, %v2444, %v2447
  %v2465 = vsel %vm2463, %v2453, 2102212464
  %v2466 = vsel %vm2462, %v2450, %v2465
  %v2467 = vsel %vm2461, %v2464, %v2466
  %v2468 = vsel %vm2460, %v2447, %v2450
  %v2469 = vsel %vm2463, %v2456, 920167782
  %v2470 = vsel %vm2462, %v2453, %v2469
  %v2471 = vsel %vm2461, %v2468, %v2470
  %v2472 = vsel %vm2460, %v2450, %v2453
  %v2473 = vsel %vm2463, %v2459, 1326507024
  %v2474 = vsel %vm2462, %v2456, %v2473
  %v2475 = vsel %vm2461, %v2472, %v2474
  %v2476 = vshll.u32 %v2436, 8
  %v2477 = vmul.u32.u64.compose %v2476, %v2475
  %v2478 = vextract.low.u32 %v2477
  %v2479 = vextract.high.u32 %v2477
  %v2480 = vmul.u32.u64.compose %v2476, %v2471
  %v2481 = vextract.low.u32 %v2480
  %v2482 = vextract.high.u32 %v2480
  %v2483 = vmul.u32 %v2476, %v2467
  %v2484 = vadd.s32 %v2479, %v2481
  %vm2485 = vc.u32 %v2479, %v2481
  %v2486 = vadd.s32 %v2482, 1
  %v2487 = vsel %vm2485, %v2486, %v2482
  %v2488 = vadd.s32 %v2483, %v2487
  %v2489 = vadd.s32 %v2488, 536870912
  %v2490 = vshrl.u32 %v2489, 30
  %v2491 = vshll.u32 %v2490, 30
  %v2492 = vsub.s32 %v2488, %v2491
  %vm2493 = vcmp.lt.s32.totalorder %v2492, 0
  %v2494 = vsub.s32 0, %v2492
  %v2495 = vsel %vm2493, %v2494, %v2492
  %v2496 = vclz %v2495
  %v2497 = vsub.s32 %v2496, 2
  %vm2498 = vcmp.gt.s32.totalorder 0, %v2497
  %v2499 = vsel %vm2498, 0, %v2497
  %v2500 = vsub.s32 32, %v2499
  %v2501 = vshll.u32 %v2492, %v2499
  %v2502 = vshrl.u32 %v2484, %v2500
  %v2503 = vor.u32 %v2501, %v2502
  %v2504 = vsub.s32 4294967266, %v2499
  %v2505 = vadd.s32 %v2504, 127
  %v2506 = vshll.u32 %v2505, 23
  %v2507 = vor.u32 4788187, %v2506
  %v2508 = vand.u32 2147483647, %v2507
  %v2510 = vcvt.s32.f32 %v2503
  %v2511 = vmul.f32 %v2510, %v2508
  %v2512 = vxor.u32 %v2511, 2147483648
  %v2513 = vsel %vm2430, %v2512, %v2511
  %v2514 = vsub.s32 4, %v2490
  %v2515 = vsel %vm2430, %v2514, %v2490
  %v2516 = vsel %vm2429, %v2006, %v2513
  %v2517 = vsel %vm2429, 0, %v2515
  %v2518 = vcosq.f32.pop %v2516
  %v2519 = vsinq.f32.pop %v2516
  %vm2520 = vweird.f32 %v2006
  %v2521 = vadd.s32 %v2517, 3
  %v2522 = vand.u32 %v2521, 3
  %vm2523 = vcmp.lt.s32.totalorder %v2522, 2
  %vm2524 = vcmp.eq.s32.totalorder %v2522, 0
  %v2525 = vxor.u32 %v2519, 2147483648
  %v2526 = vsel %vm2524, %v2518, %v2525
  %vm2527 = vcmp.eq.s32.totalorder %v2522, 2
  %v2528 = vxor.u32 %v2518, 2147483648
  %v2529 = vsel %vm2527, %v2528, %v2519
  %v2530 = vsel %vm2523, %v2526, %v2529
  %v2531 = vsel %vm2520, nan, %v2530
  %v2532 = vand.u32 2147483647, %v2007
  %vm2533 = vcmp.le.f32.partialorder %v2532, 0.7853982
  %vm2534 = vcmp.lt.s32.totalorder %v2007, 0
  %v2535 = vand.u32 %v2007, 2139095040
  %v2536 = vshrl.u32 %v2535, 23
  %v2537 = vsub.s32 %v2536, 127
  %v2538 = vand.u32 2147483647, %v2007
  %v2539 = vand.u32 %v2538, 8388607
  %v2540 = vor.u32 %v2539, 8388608
  %v2541 = vsub.s32 0, %v2540
  %v2542 = vadd.s32 %v2537, 1
  %vm2543 = vcmp.gt.s32.totalorder %v2542, 0
  %v2544 = vsel %vm2543, %v2542, 0
  %v2545 = vshrl.u32 %v2544, 5
  %v2546 = vand.u32 %v2544, 31
  %v2547 = vsub.s32 32, %v2546
  %v2548 = vshrl.u32 683565275, %v2547
  %v2549 = vshll.u32 683565275, %v2546
  %v2550 = vshrl.u32 2475754826, %v2547
  %v2551 = vor.u32 %v2549, %v2550
  %v2552 = vshll.u32 2475754826, %v2546
  %v2553 = vshrl.u32 2131351028, %v2547
  %v2554 = vor.u32 %v2552, %v2553
  %v2555 = vshll.u32 2131351028, %v2546
  %v2556 = vshrl.u32 2102212464, %v2547
  %v2557 = vor.u32 %v2555, %v2556
  %v2558 = vshll.u32 2102212464, %v2546
  %v2559 = vshrl.u32 920167782, %v2547
  %v2560 = vor.u32 %v2558, %v2559
  %v2561 = vshll.u32 920167782, %v2546
  %v2562 = vshrl.u32 1326507024, %v2547
  %v2563 = vor.u32 %v2561, %v2562
  %vm2564 = vcmp.lt.s32.totalorder %v2545, 1
  %vm2565 = vcmp.lt.s32.totalorder %v2545, 2
  %vm2566 = vcmp.lt.s32.totalorder %v2545, 3
  %vm2567 = vcmp.lt.s32.totalorder %v2545, 4
  %v2568 = vsel %vm2564, %v2548, %v2551
  %v2569 = vsel %vm2567, %v2557, 2102212464
  %v2570 = vsel %vm2566, %v2554, %v2569
  %v2571 = vsel %vm2565, %v2568, %v2570
  %v2572 = vsel %vm2564, %v2551, %v2554
  %v2573 = vsel %vm2567, %v2560, 920167782
  %v2574 = vsel %vm2566, %v2557, %v2573
  %v2575 = vsel %vm2565, %v2572, %v2574
  %v2576 = vsel %vm2564, %v2554, %v2557
  %v2577 = vsel %vm2567, %v2563, 1326507024
  %v2578 = vsel %vm2566, %v2560, %v2577
  %v2579 = vsel %vm2565, %v2576, %v2578
  %v2580 = vshll.u32 %v2540, 8
  %v2581 = vmul.u32.u64.compose %v2580, %v2579
  %v2582 = vextract.low.u32 %v2581
  %v2583 = vextract.high.u32 %v2581
  %v2584 = vmul.u32.u64.compose %v2580, %v2575
  %v2585 = vextract.low.u32 %v2584
  %v2586 = vextract.high.u32 %v2584
  %v2587 = vmul.u32 %v2580, %v2571
  %v2588 = vadd.s32 %v2583, %v2585
  %vm2589 = vc.u32 %v2583, %v2585
  %v2590 = vadd.s32 %v2586, 1
  %v2591 = vsel %vm2589, %v2590, %v2586
  %v2592 = vadd.s32 %v2587, %v2591
  %v2593 = vadd.s32 %v2592, 536870912
  %v2594 = vshrl.u32 %v2593, 30
  %v2595 = vshll.u32 %v2594, 30
  %v2596 = vsub.s32 %v2592, %v2595
  %vm2597 = vcmp.lt.s32.totalorder %v2596, 0
  %v2598 = vsub.s32 0, %v2596
  %v2599 = vsel %vm2597, %v2598, %v2596
  %v2600 = vclz %v2599
  %v2601 = vsub.s32 %v2600, 2
  %vm2602 = vcmp.gt.s32.totalorder 0, %v2601
  %v2603 = vsel %vm2602, 0, %v2601
  %v2604 = vsub.s32 32, %v2603
  %v2605 = vshll.u32 %v2596, %v2603
  %v2606 = vshrl.u32 %v2588, %v2604
  %v2607 = vor.u32 %v2605, %v2606
  %v2608 = vsub.s32 4294967266, %v2603
  %v2609 = vadd.s32 %v2608, 127
  %v2610 = vshll.u32 %v2609, 23
  %v2611 = vor.u32 4788187, %v2610
  %v2612 = vand.u32 2147483647, %v2611
  %v2614 = vcvt.s32.f32 %v2607
  %v2615 = vmul.f32 %v2614, %v2612
  %v2616 = vxor.u32 %v2615, 2147483648
  %v2617 = vsel %vm2534, %v2616, %v2615
  %v2618 = vsub.s32 4, %v2594
  %v2619 = vsel %vm2534, %v2618, %v2594
  %v2620 = vsel %vm2533, %v2007, %v2617
  %v2621 = vsel %vm2533, 0, %v2619
  %v2622 = vcosq.f32.pop %v2620
  %v2623 = vsinq.f32.pop %v2620
  %vm2624 = vweird.f32 %v2007
  %v2625 = vadd.s32 %v2621, 3
  %v2626 = vand.u32 %v2625, 3
  %vm2627 = vcmp.lt.s32.totalorder %v2626, 2
  %vm2628 = vcmp.eq.s32.totalorder %v2626, 0
  %v2629 = vxor.u32 %v2623, 2147483648
  %v2630 = vsel %vm2628, %v2622, %v2629
  %vm2631 = vcmp.eq.s32.totalorder %v2626, 2
  %v2632 = vxor.u32 %v2622, 2147483648
  %v2633 = vsel %vm2631, %v2632, %v2623
  %v2634 = vsel %vm2627, %v2630, %v2633
  %v2635 = vsel %vm2624, nan, %v2634
  %v2636 = vand.u32 2147483647, %v2008
  %vm2637 = vcmp.le.f32.partialorder %v2636, 0.7853982
  %vm2638 = vcmp.lt.s32.totalorder %v2008, 0
  %v2639 = vand.u32 %v2008, 2139095040
  %v2640 = vshrl.u32 %v2639, 23
  %v2641 = vsub.s32 %v2640, 127
  %v2642 = vand.u32 2147483647, %v2008
  %v2643 = vand.u32 %v2642, 8388607
  %v2644 = vor.u32 %v2643, 8388608
  %v2645 = vsub.s32 0, %v2644
  %v2646 = vadd.s32 %v2641, 1
  %vm2647 = vcmp.gt.s32.totalorder %v2646, 0
  %v2648 = vsel %vm2647, %v2646, 0
  %v2649 = vshrl.u32 %v2648, 5
  %v2650 = vand.u32 %v2648, 31
  %v2651 = vsub.s32 32, %v2650
  %v2652 = vshrl.u32 683565275, %v2651
  %v2653 = vshll.u32 683565275, %v2650
  %v2654 = vshrl.u32 2475754826, %v2651
  %v2655 = vor.u32 %v2653, %v2654
  %v2656 = vshll.u32 2475754826, %v2650
  %v2657 = vshrl.u32 2131351028, %v2651
  %v2658 = vor.u32 %v2656, %v2657
  %v2659 = vshll.u32 2131351028, %v2650
  %v2660 = vshrl.u32 2102212464, %v2651
  %v2661 = vor.u32 %v2659, %v2660
  %v2662 = vshll.u32 2102212464, %v2650
  %v2663 = vshrl.u32 920167782, %v2651
  %v2664 = vor.u32 %v2662, %v2663
  %v2665 = vshll.u32 920167782, %v2650
  %v2666 = vshrl.u32 1326507024, %v2651
  %v2667 = vor.u32 %v2665, %v2666
  %vm2668 = vcmp.lt.s32.totalorder %v2649, 1
  %vm2669 = vcmp.lt.s32.totalorder %v2649, 2
  %vm2670 = vcmp.lt.s32.totalorder %v2649, 3
  %vm2671 = vcmp.lt.s32.totalorder %v2649, 4
  %v2672 = vsel %vm2668, %v2652, %v2655
  %v2673 = vsel %vm2671, %v2661, 2102212464
  %v2674 = vsel %vm2670, %v2658, %v2673
  %v2675 = vsel %vm2669, %v2672, %v2674
  %v2676 = vsel %vm2668, %v2655, %v2658
  %v2677 = vsel %vm2671, %v2664, 920167782
  %v2678 = vsel %vm2670, %v2661, %v2677
  %v2679 = vsel %vm2669, %v2676, %v2678
  %v2680 = vsel %vm2668, %v2658, %v2661
  %v2681 = vsel %vm2671, %v2667, 1326507024
  %v2682 = vsel %vm2670, %v2664, %v2681
  %v2683 = vsel %vm2669, %v2680, %v2682
  %v2684 = vshll.u32 %v2644, 8
  %v2685 = vmul.u32.u64.compose %v2684, %v2683
  %v2686 = vextract.low.u32 %v2685
  %v2687 = vextract.high.u32 %v2685
  %v2688 = vmul.u32.u64.compose %v2684, %v2679
  %v2689 = vextract.low.u32 %v2688
  %v2690 = vextract.high.u32 %v2688
  %v2691 = vmul.u32 %v2684, %v2675
  %v2692 = vadd.s32 %v2687, %v2689
  %vm2693 = vc.u32 %v2687, %v2689
  %v2694 = vadd.s32 %v2690, 1
  %v2695 = vsel %vm2693, %v2694, %v2690
  %v2696 = vadd.s32 %v2691, %v2695
  %v2697 = vadd.s32 %v2696, 536870912
  %v2698 = vshrl.u32 %v2697, 30
  %v2699 = vshll.u32 %v2698, 30
  %v2700 = vsub.s32 %v2696, %v2699
  %vm2701 = vcmp.lt.s32.totalorder %v2700, 0
  %v2702 = vsub.s32 0, %v2700
  %v2703 = vsel %vm2701, %v2702, %v2700
  %v2704 = vclz %v2703
  %v2705 = vsub.s32 %v2704, 2
  %vm2706 = vcmp.gt.s32.totalorder 0, %v2705
  %v2707 = vsel %vm2706, 0, %v2705
  %v2708 = vsub.s32 32, %v2707
  %v2709 = vshll.u32 %v2700, %v2707
  %v2710 = vshrl.u32 %v2692, %v2708
  %v2711 = vor.u32 %v2709, %v2710
  %v2712 = vsub.s32 4294967266, %v2707
  %v2713 = vadd.s32 %v2712, 127
  %v2714 = vshll.u32 %v2713, 23
  %v2715 = vor.u32 4788187, %v2714
  %v2716 = vand.u32 2147483647, %v2715
  %v2718 = vcvt.s32.f32 %v2711
  %v2719 = vmul.f32 %v2718, %v2716
  %v2720 = vxor.u32 %v2719, 2147483648
  %v2721 = vsel %vm2638, %v2720, %v2719
  %v2722 = vsub.s32 4, %v2698
  %v2723 = vsel %vm2638, %v2722, %v2698
  %v2724 = vsel %vm2637, %v2008, %v2721
  %v2725 = vsel %vm2637, 0, %v2723
  %v2726 = vcosq.f32.pop %v2724
  %v2727 = vsinq.f32.pop %v2724
  %vm2728 = vweird.f32 %v2008
  %v2729 = vadd.s32 %v2725, 3
  %v2730 = vand.u32 %v2729, 3
  %vm2731 = vcmp.lt.s32.totalorder %v2730, 2
  %vm2732 = vcmp.eq.s32.totalorder %v2730, 0
  %v2733 = vxor.u32 %v2727, 2147483648
  %v2734 = vsel %vm2732, %v2726, %v2733
  %vm2735 = vcmp.eq.s32.totalorder %v2730, 2
  %v2736 = vxor.u32 %v2726, 2147483648
  %v2737 = vsel %vm2735, %v2736, %v2727
  %v2738 = vsel %vm2731, %v2734, %v2737
  %v2739 = vsel %vm2728, nan, %v2738
  %v2740 = vand.u32 2147483647, %v2009
  %vm2741 = vcmp.le.f32.partialorder %v2740, 0.7853982
  %vm2742 = vcmp.lt.s32.totalorder %v2009, 0
  %v2743 = vand.u32 %v2009, 2139095040
  %v2744 = vshrl.u32 %v2743, 23
  %v2745 = vsub.s32 %v2744, 127
  %v2746 = vand.u32 2147483647, %v2009
  %v2747 = vand.u32 %v2746, 8388607
  %v2748 = vor.u32 %v2747, 8388608
  %v2749 = vsub.s32 0, %v2748
  %v2750 = vadd.s32 %v2745, 1
  %vm2751 = vcmp.gt.s32.totalorder %v2750, 0
  %v2752 = vsel %vm2751, %v2750, 0
  %v2753 = vshrl.u32 %v2752, 5
  %v2754 = vand.u32 %v2752, 31
  %v2755 = vsub.s32 32, %v2754
  %v2756 = vshrl.u32 683565275, %v2755
  %v2757 = vshll.u32 683565275, %v2754
  %v2758 = vshrl.u32 2475754826, %v2755
  %v2759 = vor.u32 %v2757, %v2758
  %v2760 = vshll.u32 2475754826, %v2754
  %v2761 = vshrl.u32 2131351028, %v2755
  %v2762 = vor.u32 %v2760, %v2761
  %v2763 = vshll.u32 2131351028, %v2754
  %v2764 = vshrl.u32 2102212464, %v2755
  %v2765 = vor.u32 %v2763, %v2764
  %v2766 = vshll.u32 2102212464, %v2754
  %v2767 = vshrl.u32 920167782, %v2755
  %v2768 = vor.u32 %v2766, %v2767
  %v2769 = vshll.u32 920167782, %v2754
  %v2770 = vshrl.u32 1326507024, %v2755
  %v2771 = vor.u32 %v2769, %v2770
  %vm2772 = vcmp.lt.s32.totalorder %v2753, 1
  %vm2773 = vcmp.lt.s32.totalorder %v2753, 2
  %vm2774 = vcmp.lt.s32.totalorder %v2753, 3
  %vm2775 = vcmp.lt.s32.totalorder %v2753, 4
  %v2776 = vsel %vm2772, %v2756, %v2759
  %v2777 = vsel %vm2775, %v2765, 2102212464
  %v2778 = vsel %vm2774, %v2762, %v2777
  %v2779 = vsel %vm2773, %v2776, %v2778
  %v2780 = vsel %vm2772, %v2759, %v2762
  %v2781 = vsel %vm2775, %v2768, 920167782
  %v2782 = vsel %vm2774, %v2765, %v2781
  %v2783 = vsel %vm2773, %v2780, %v2782
  %v2784 = vsel %vm2772, %v2762, %v2765
  %v2785 = vsel %vm2775, %v2771, 1326507024
  %v2786 = vsel %vm2774, %v2768, %v2785
  %v2787 = vsel %vm2773, %v2784, %v2786
  %v2788 = vshll.u32 %v2748, 8
  %v2789 = vmul.u32.u64.compose %v2788, %v2787
  %v2790 = vextract.low.u32 %v2789
  %v2791 = vextract.high.u32 %v2789
  %v2792 = vmul.u32.u64.compose %v2788, %v2783
  %v2793 = vextract.low.u32 %v2792
  %v2794 = vextract.high.u32 %v2792
  %v2795 = vmul.u32 %v2788, %v2779
  %v2796 = vadd.s32 %v2791, %v2793
  %vm2797 = vc.u32 %v2791, %v2793
  %v2798 = vadd.s32 %v2794, 1
  %v2799 = vsel %vm2797, %v2798, %v2794
  %v2800 = vadd.s32 %v2795, %v2799
  %v2801 = vadd.s32 %v2800, 536870912
  %v2802 = vshrl.u32 %v2801, 30
  %v2803 = vshll.u32 %v2802, 30
  %v2804 = vsub.s32 %v2800, %v2803
  %vm2805 = vcmp.lt.s32.totalorder %v2804, 0
  %v2806 = vsub.s32 0, %v2804
  %v2807 = vsel %vm2805, %v2806, %v2804
  %v2808 = vclz %v2807
  %v2809 = vsub.s32 %v2808, 2
  %vm2810 = vcmp.gt.s32.totalorder 0, %v2809
  %v2811 = vsel %vm2810, 0, %v2809
  %v2812 = vsub.s32 32, %v2811
  %v2813 = vshll.u32 %v2804, %v2811
  %v2814 = vshrl.u32 %v2796, %v2812
  %v2815 = vor.u32 %v2813, %v2814
  %v2816 = vsub.s32 4294967266, %v2811
  %v2817 = vadd.s32 %v2816, 127
  %v2818 = vshll.u32 %v2817, 23
  %v2819 = vor.u32 4788187, %v2818
  %v2820 = vand.u32 2147483647, %v2819
  %v2822 = vcvt.s32.f32 %v2815
  %v2823 = vmul.f32 %v2822, %v2820
  %v2824 = vxor.u32 %v2823, 2147483648
  %v2825 = vsel %vm2742, %v2824, %v2823
  %v2826 = vsub.s32 4, %v2802
  %v2827 = vsel %vm2742, %v2826, %v2802
  %v2828 = vsel %vm2741, %v2009, %v2825
  %v2829 = vsel %vm2741, 0, %v2827
  %v2830 = vcosq.f32.pop %v2828
  %v2831 = vsinq.f32.pop %v2828
  %vm2832 = vweird.f32 %v2009
  %v2833 = vadd.s32 %v2829, 3
  %v2834 = vand.u32 %v2833, 3
  %vm2835 = vcmp.lt.s32.totalorder %v2834, 2
  %vm2836 = vcmp.eq.s32.totalorder %v2834, 0
  %v2837 = vxor.u32 %v2831, 2147483648
  %v2838 = vsel %vm2836, %v2830, %v2837
  %vm2839 = vcmp.eq.s32.totalorder %v2834, 2
  %v2840 = vxor.u32 %v2830, 2147483648
  %v2841 = vsel %vm2839, %v2840, %v2831
  %v2842 = vsel %vm2835, %v2838, %v2841
  %v2843 = vsel %vm2832, nan, %v2842
  %v2844 = vand.u32 2147483647, %v2010
  %vm2845 = vcmp.le.f32.partialorder %v2844, 0.7853982
  %vm2846 = vcmp.lt.s32.totalorder %v2010, 0
  %v2847 = vand.u32 %v2010, 2139095040
  %v2848 = vshrl.u32 %v2847, 23
  %v2849 = vsub.s32 %v2848, 127
  %v2850 = vand.u32 2147483647, %v2010
  %v2851 = vand.u32 %v2850, 8388607
  %v2852 = vor.u32 %v2851, 8388608
  %v2853 = vsub.s32 0, %v2852
  %v2854 = vadd.s32 %v2849, 1
  %vm2855 = vcmp.gt.s32.totalorder %v2854, 0
  %v2856 = vsel %vm2855, %v2854, 0
  %v2857 = vshrl.u32 %v2856, 5
  %v2858 = vand.u32 %v2856, 31
  %v2859 = vsub.s32 32, %v2858
  %v2860 = vshrl.u32 683565275, %v2859
  %v2861 = vshll.u32 683565275, %v2858
  %v2862 = vshrl.u32 2475754826, %v2859
  %v2863 = vor.u32 %v2861, %v2862
  %v2864 = vshll.u32 2475754826, %v2858
  %v2865 = vshrl.u32 2131351028, %v2859
  %v2866 = vor.u32 %v2864, %v2865
  %v2867 = vshll.u32 2131351028, %v2858
  %v2868 = vshrl.u32 2102212464, %v2859
  %v2869 = vor.u32 %v2867, %v2868
  %v2870 = vshll.u32 2102212464, %v2858
  %v2871 = vshrl.u32 920167782, %v2859
  %v2872 = vor.u32 %v2870, %v2871
  %v2873 = vshll.u32 920167782, %v2858
  %v2874 = vshrl.u32 1326507024, %v2859
  %v2875 = vor.u32 %v2873, %v2874
  %vm2876 = vcmp.lt.s32.totalorder %v2857, 1
  %vm2877 = vcmp.lt.s32.totalorder %v2857, 2
  %vm2878 = vcmp.lt.s32.totalorder %v2857, 3
  %vm2879 = vcmp.lt.s32.totalorder %v2857, 4
  %v2880 = vsel %vm2876, %v2860, %v2863
  %v2881 = vsel %vm2879, %v2869, 2102212464
  %v2882 = vsel %vm2878, %v2866, %v2881
  %v2883 = vsel %vm2877, %v2880, %v2882
  %v2884 = vsel %vm2876, %v2863, %v2866
  %v2885 = vsel %vm2879, %v2872, 920167782
  %v2886 = vsel %vm2878, %v2869, %v2885
  %v2887 = vsel %vm2877, %v2884, %v2886
  %v2888 = vsel %vm2876, %v2866, %v2869
  %v2889 = vsel %vm2879, %v2875, 1326507024
  %v2890 = vsel %vm2878, %v2872, %v2889
  %v2891 = vsel %vm2877, %v2888, %v2890
  %v2892 = vshll.u32 %v2852, 8
  %v2893 = vmul.u32.u64.compose %v2892, %v2891
  %v2894 = vextract.low.u32 %v2893
  %v2895 = vextract.high.u32 %v2893
  %v2896 = vmul.u32.u64.compose %v2892, %v2887
  %v2897 = vextract.low.u32 %v2896
  %v2898 = vextract.high.u32 %v2896
  %v2899 = vmul.u32 %v2892, %v2883
  %v2900 = vadd.s32 %v2895, %v2897
  %vm2901 = vc.u32 %v2895, %v2897
  %v2902 = vadd.s32 %v2898, 1
  %v2903 = vsel %vm2901, %v2902, %v2898
  %v2904 = vadd.s32 %v2899, %v2903
  %v2905 = vadd.s32 %v2904, 536870912
  %v2906 = vshrl.u32 %v2905, 30
  %v2907 = vshll.u32 %v2906, 30
  %v2908 = vsub.s32 %v2904, %v2907
  %vm2909 = vcmp.lt.s32.totalorder %v2908, 0
  %v2910 = vsub.s32 0, %v2908
  %v2911 = vsel %vm2909, %v2910, %v2908
  %v2912 = vclz %v2911
  %v2913 = vsub.s32 %v2912, 2
  %vm2914 = vcmp.gt.s32.totalorder 0, %v2913
  %v2915 = vsel %vm2914, 0, %v2913
  %v2916 = vsub.s32 32, %v2915
  %v2917 = vshll.u32 %v2908, %v2915
  %v2918 = vshrl.u32 %v2900, %v2916
  %v2919 = vor.u32 %v2917, %v2918
  %v2920 = vsub.s32 4294967266, %v2915
  %v2921 = vadd.s32 %v2920, 127
  %v2922 = vshll.u32 %v2921, 23
  %v2923 = vor.u32 4788187, %v2922
  %v2924 = vand.u32 2147483647, %v2923
  %v2926 = vcvt.s32.f32 %v2919
  %v2927 = vmul.f32 %v2926, %v2924
  %v2928 = vxor.u32 %v2927, 2147483648
  %v2929 = vsel %vm2846, %v2928, %v2927
  %v2930 = vsub.s32 4, %v2906
  %v2931 = vsel %vm2846, %v2930, %v2906
  %v2932 = vsel %vm2845, %v2010, %v2929
  %v2933 = vsel %vm2845, 0, %v2931
  %v2934 = vcosq.f32.pop %v2932
  %v2935 = vsinq.f32.pop %v2932
  %vm2936 = vweird.f32 %v2010
  %v2937 = vadd.s32 %v2933, 3
  %v2938 = vand.u32 %v2937, 3
  %vm2939 = vcmp.lt.s32.totalorder %v2938, 2
  %vm2940 = vcmp.eq.s32.totalorder %v2938, 0
  %v2941 = vxor.u32 %v2935, 2147483648
  %v2942 = vsel %vm2940, %v2934, %v2941
  %vm2943 = vcmp.eq.s32.totalorder %v2938, 2
  %v2944 = vxor.u32 %v2934, 2147483648
  %v2945 = vsel %vm2943, %v2944, %v2935
  %v2946 = vsel %vm2939, %v2942, %v2945
  %v2947 = vsel %vm2936, nan, %v2946
  %v2948 = vand.u32 2147483647, %v2011
  %vm2949 = vcmp.le.f32.partialorder %v2948, 0.7853982
  %vm2950 = vcmp.lt.s32.totalorder %v2011, 0
  %v2951 = vand.u32 %v2011, 2139095040
  %v2952 = vshrl.u32 %v2951, 23
  %v2953 = vsub.s32 %v2952, 127
  %v2954 = vand.u32 2147483647, %v2011
  %v2955 = vand.u32 %v2954, 8388607
  %v2956 = vor.u32 %v2955, 8388608
  %v2957 = vsub.s32 0, %v2956
  %v2958 = vadd.s32 %v2953, 1
  %vm2959 = vcmp.gt.s32.totalorder %v2958, 0
  %v2960 = vsel %vm2959, %v2958, 0
  %v2961 = vshrl.u32 %v2960, 5
  %v2962 = vand.u32 %v2960, 31
  %v2963 = vsub.s32 32, %v2962
  %v2964 = vshrl.u32 683565275, %v2963
  %v2965 = vshll.u32 683565275, %v2962
  %v2966 = vshrl.u32 2475754826, %v2963
  %v2967 = vor.u32 %v2965, %v2966
  %v2968 = vshll.u32 2475754826, %v2962
  %v2969 = vshrl.u32 2131351028, %v2963
  %v2970 = vor.u32 %v2968, %v2969
  %v2971 = vshll.u32 2131351028, %v2962
  %v2972 = vshrl.u32 2102212464, %v2963
  %v2973 = vor.u32 %v2971, %v2972
  %v2974 = vshll.u32 2102212464, %v2962
  %v2975 = vshrl.u32 920167782, %v2963
  %v2976 = vor.u32 %v2974, %v2975
  %v2977 = vshll.u32 920167782, %v2962
  %v2978 = vshrl.u32 1326507024, %v2963
  %v2979 = vor.u32 %v2977, %v2978
  %vm2980 = vcmp.lt.s32.totalorder %v2961, 1
  %vm2981 = vcmp.lt.s32.totalorder %v2961, 2
  %vm2982 = vcmp.lt.s32.totalorder %v2961, 3
  %vm2983 = vcmp.lt.s32.totalorder %v2961, 4
  %v2984 = vsel %vm2980, %v2964, %v2967
  %v2985 = vsel %vm2983, %v2973, 2102212464
  %v2986 = vsel %vm2982, %v2970, %v2985
  %v2987 = vsel %vm2981, %v2984, %v2986
  %v2988 = vsel %vm2980, %v2967, %v2970
  %v2989 = vsel %vm2983, %v2976, 920167782
  %v2990 = vsel %vm2982, %v2973, %v2989
  %v2991 = vsel %vm2981, %v2988, %v2990
  %v2992 = vsel %vm2980, %v2970, %v2973
  %v2993 = vsel %vm2983, %v2979, 1326507024
  %v2994 = vsel %vm2982, %v2976, %v2993
  %v2995 = vsel %vm2981, %v2992, %v2994
  %v2996 = vshll.u32 %v2956, 8
  %v2997 = vmul.u32.u64.compose %v2996, %v2995
  %v2998 = vextract.low.u32 %v2997
  %v2999 = vextract.high.u32 %v2997
  %v3000 = vmul.u32.u64.compose %v2996, %v2991
  %v3001 = vextract.low.u32 %v3000
  %v3002 = vextract.high.u32 %v3000
  %v3003 = vmul.u32 %v2996, %v2987
  %v3004 = vadd.s32 %v2999, %v3001
  %vm3005 = vc.u32 %v2999, %v3001
  %v3006 = vadd.s32 %v3002, 1
  %v3007 = vsel %vm3005, %v3006, %v3002
  %v3008 = vadd.s32 %v3003, %v3007
  %v3009 = vadd.s32 %v3008, 536870912
  %v3010 = vshrl.u32 %v3009, 30
  %v3011 = vshll.u32 %v3010, 30
  %v3012 = vsub.s32 %v3008, %v3011
  %vm3013 = vcmp.lt.s32.totalorder %v3012, 0
  %v3014 = vsub.s32 0, %v3012
  %v3015 = vsel %vm3013, %v3014, %v3012
  %v3016 = vclz %v3015
  %v3017 = vsub.s32 %v3016, 2
  %vm3018 = vcmp.gt.s32.totalorder 0, %v3017
  %v3019 = vsel %vm3018, 0, %v3017
  %v3020 = vsub.s32 32, %v3019
  %v3021 = vshll.u32 %v3012, %v3019
  %v3022 = vshrl.u32 %v3004, %v3020
  %v3023 = vor.u32 %v3021, %v3022
  %v3024 = vsub.s32 4294967266, %v3019
  %v3025 = vadd.s32 %v3024, 127
  %v3026 = vshll.u32 %v3025, 23
  %v3027 = vor.u32 4788187, %v3026
  %v3028 = vand.u32 2147483647, %v3027
  %v3030 = vcvt.s32.f32 %v3023
  %v3031 = vmul.f32 %v3030, %v3028
  %v3032 = vxor.u32 %v3031, 2147483648
  %v3033 = vsel %vm2950, %v3032, %v3031
  %v3034 = vsub.s32 4, %v3010
  %v3035 = vsel %vm2950, %v3034, %v3010
  %v3036 = vsel %vm2949, %v2011, %v3033
  %v3037 = vsel %vm2949, 0, %v3035
  %v3038 = vcosq.f32.pop %v3036
  %v3039 = vsinq.f32.pop %v3036
  %vm3040 = vweird.f32 %v2011
  %v3041 = vadd.s32 %v3037, 3
  %v3042 = vand.u32 %v3041, 3
  %vm3043 = vcmp.lt.s32.totalorder %v3042, 2
  %vm3044 = vcmp.eq.s32.totalorder %v3042, 0
  %v3045 = vxor.u32 %v3039, 2147483648
  %v3046 = vsel %vm3044, %v3038, %v3045
  %vm3047 = vcmp.eq.s32.totalorder %v3042, 2
  %v3048 = vxor.u32 %v3038, 2147483648
  %v3049 = vsel %vm3047, %v3048, %v3039
  %v3050 = vsel %vm3043, %v3046, %v3049
  %v3051 = vsel %vm3040, nan, %v3050
  %v3052 = vadd.f32 %v1928, %v2115
  %v3053 = vadd.f32 %v1929, %v2219
  %v3054 = vadd.f32 %v1930, %v2323
  %v3055 = vadd.f32 %v1931, %v2427
  %v3056 = vadd.f32 %v1932, %v2531
  %v3057 = vadd.f32 %v1933, %v2635
  %v3058 = vadd.f32 %v1934, %v2739
  %v3059 = vadd.f32 %v1935, %v2843
  %v3060 = vadd.f32 %v1936, %v2947
  %v3061 = vadd.f32 %v1937, %v3051
  %3062 = vst [vmem:[%s5] sm:$0xff] %v3052
  %3063 = vst [vmem:[%s5 + $0x8] sm:$0xff] %v3053
  %3064 = vst [vmem:[%s5 + $0x10] sm:$0xff] %v3054
  %3065 = vst [vmem:[%s5 + $0x18] sm:$0xff] %v3055
  %vm3066 = vcmask 916480
  %3067 = vst.msk [vmem:[%s5 + $0x20] sm:$0xff] %vm3066, %v3056
  %3068 = vst [vmem:[%s5 + $0x28] sm:$0xff] %v3057
  %3069 = vst [vmem:[%s5 + $0x30] sm:$0xff] %v3058
  %3070 = vst [vmem:[%s5 + $0x38] sm:$0xff] %v3059
  %3071 = vst [vmem:[%s5 + $0x40] sm:$0xff] %v3060
  %3072 = vst.msk [vmem:[%s5 + $0x48] sm:$0xff] %vm3066, %v3061
  // Predicated region
  $region22: #{_forward_val_only.1} parent=0 // pred_check
    _
  $region23: #{_forward_val_only.1} parent=0 // pred_check_branch
    %3074 = sbr.rel (0) target = $region25
  $region24: #{_forward_val_only.1} parent=0 // pred_region
    _
  $region25: #{_forward_val_only.1} parent=0 // pred_fallthru
    _
  // Predicated region
  $region26: #{_forward_val_only.1} parent=0 // pred_check
    _
  $region27: #{_forward_val_only.1} parent=0 // pred_check_branch
    %3076 = sbr.rel (0) target = $region29
  $region28: #{_forward_val_only.1} parent=0 // pred_region
    _
  $region29: #{_forward_val_only.1} parent=0 // pred_fallthru
    _

</llo_original>
